<compile_context>
chip_gen: v7x
topology: tpu7x:2x2x1
jax: 0.10.0
libtpu: 0.0.40
codegen_flags: <defaults>
</compile_context>

<pallas_src>
import functools

import jax
import jax.numpy as jnp
from jax.experimental import pallas as pl
from jax.experimental.pallas import tpu as pltpu

LRELU_SLOPE = 0.2
BN_EPS = 0.8

D_IN = 50        # true input feature dim
D_IN_PAD = 64    # padded contraction dim of the first matmul
D_OUT_PAD = 128  # lane-dense padded width of the final layer


def _leaky_relu(x):
    return jnp.where(x > 0, x, LRELU_SLOPE * x)


def _dot_bf16(h_f32, w_ref):
    # bf16 x bf16 MXU matmul with f32 accumulation.
    return jnp.dot(h_f32.astype(jnp.bfloat16), w_ref[...],
                   preferred_element_type=jnp.float32)


def generator_kernel(
    x_ref,
    w1_ref, b1_ref,
    w2_ref, b2_ref, g2_ref, be2_ref,
    w3_ref, b3_ref, g3_ref, be3_ref,
    w4_hbm, b4_ref, g4_ref, be4_ref,
    w5_hbm, b5_ref,
    o_ref,
    w4_buf, w5_buf, dma_sem,
    *, true_b,
):
    # Kick off the big late-layer weight DMAs immediately; they complete while
    # the layer-1..3 matmuls run (P4-style manual overlap, no grid here).
    w4_cp = pltpu.make_async_copy(w4_hbm, w4_buf, dma_sem.at[0])
    w5_cp = pltpu.make_async_copy(w5_hbm, w5_buf, dma_sem.at[1])
    w4_cp.start()
    w5_cp.start()

    b_pad = x_ref.shape[0]
    inv_b = 1.0 / float(true_b)
    # Row mask so BN statistics only see the true batch rows (padding rows are
    # compute-garbage that gets sliced away in the wrapper).
    row_ids = jax.lax.broadcasted_iota(jnp.int32, (b_pad, 1), 0)
    row_mask = (row_ids < true_b).astype(jnp.float32)

    # Block 1: Linear(50->128) (K zero-padded to 64) + LeakyReLU, no BN.
    h = _leaky_relu(_dot_bf16(x_ref[...], w1_ref) + b1_ref[...])

    def lin_bn_lrelu(h, w_ref, b_ref, g_ref, be_ref):
        z = _dot_bf16(h, w_ref) + b_ref[...]
        # Training-mode BatchNorm1d (biased variance, eps=0.8), one pass,
        # folded into a single per-feature scale/shift.
        zm = z * row_mask
        mean = jnp.sum(zm, axis=0, keepdims=True) * inv_b
        mean_sq = jnp.sum(zm * zm, axis=0, keepdims=True) * inv_b
        var = jnp.maximum(mean_sq - mean * mean, 0.0)
        scale = g_ref[...] * jax.lax.rsqrt(var + BN_EPS)
        shift = be_ref[...] - mean * scale
        return _leaky_relu(z * scale + shift)

    h = lin_bn_lrelu(h, w2_ref, b2_ref, g2_ref, be2_ref)   # 128 -> 256
    h = lin_bn_lrelu(h, w3_ref, b3_ref, g3_ref, be3_ref)   # 256 -> 512

    w4_cp.wait()                                           # hidden behind 1-3
    h = lin_bn_lrelu(h, w4_buf, b4_ref, g4_ref, be4_ref)   # 512 -> 1024

    w5_cp.wait()
    # Final Linear(1024 -> n_features), N zero-padded to 128 lanes, + Tanh.
    o_ref[...] = jnp.tanh(_dot_bf16(h, w5_buf) + b5_ref[...])


def generator_forward(x, params, n_features):
    """x: (B, 50) float32. params: flat list (see init_params). Returns (B, n_features)."""
    B = x.shape[0]
    # Pad batch to a multiple of 16 (bf16 packs 16 rows per vreg on the MXU
    # feed path); BN statistics are masked to the true B inside the kernel.
    B_pad = max(16, ((B + 15) // 16) * 16)
    # Zero-pad input features 50 -> 64 so the first contraction is tile-aligned.
    x_pad = jnp.zeros((B_pad, D_IN_PAD), jnp.float32).at[:B, :D_IN].set(x)

    vmem = pl.BlockSpec(memory_space=pltpu.MemorySpace.VMEM)
    any_spec = pl.BlockSpec(memory_space=pl.ANY)
    in_specs = [vmem] * (1 + len(params))
    in_specs[11] = any_spec   # w4 (512x1024 bf16): manual async copy
    in_specs[15] = any_spec   # w5 (1024x128 bf16): manual async copy

    out_pad = pl.pallas_call(
        functools.partial(generator_kernel, true_b=B),
        out_shape=jax.ShapeDtypeStruct((B_pad, D_OUT_PAD), jnp.float32),
        in_specs=in_specs,
        out_specs=vmem,
        scratch_shapes=[
            pltpu.VMEM((512, 1024), jnp.bfloat16),      # w4 landing buffer
            pltpu.VMEM((1024, D_OUT_PAD), jnp.bfloat16),  # w5 landing buffer
            pltpu.SemaphoreType.DMA((2,)),
        ],
        compiler_params=pltpu.CompilerParams(vmem_limit_bytes=16 << 20),
    )(x_pad, *params)
    # Slice off batch + lane padding in the wrapper (free layout plumbing).
    return out_pad[:B, :n_features]


def init_params(key, n_features):
    """Deterministic synthetic parameters matching the module's shapes.

    Linear weights are pre-transposed to (in, out) and stored as bf16; the
    first layer's weight is zero-padded along K (50->64) and the last layer's
    weight/bias are zero-padded along N (n_features->128). Biases and BN affine
    params stay f32 with shape (1, out) for lane-dense broadcasting.
    """
    dims = [D_IN, 128, 256, 512, 1024, n_features]
    params = []
    keys = jax.random.split(key, 10)
    ki = 0
    for li in range(5):
        fin, fout = dims[li], dims[li + 1]
        bound = 1.0 / float(fin) ** 0.5  # PyTorch default Linear init range
        w = jax.random.uniform(keys[ki], (fin, fout), jnp.float32, -bound, bound)
        ki += 1
        b = jax.random.uniform(keys[ki], (1, fout), jnp.float32, -bound, bound)
        ki += 1
        if li == 0:   # pad K: 50 -> 64 with zero rows
            w = jnp.zeros((D_IN_PAD, fout), jnp.float32).at[:fin].set(w)
        if li == 4:   # pad N: n_features -> 128 with zero columns
            w = jnp.zeros((dims[4], D_OUT_PAD), jnp.float32).at[:, :fout].set(w)
            b = jnp.zeros((1, D_OUT_PAD), jnp.float32).at[:, :fout].set(b)
        params.extend([w.astype(jnp.bfloat16), b])
        if li in (1, 2, 3):  # blocks 2..4 have BatchNorm1d (gamma=1, beta=0)
            params.extend([jnp.ones((1, fout), jnp.float32),
                           jnp.zeros((1, fout), jnp.float32)])
    return params


def generator_reference(x, params, n_features):
    """Pure-JAX reference mirroring the kernel math (bf16 matmul operands, f32 accum)."""
    (w1, b1,
     w2, b2, g2, be2,
     w3, b3, g3, be3,
     w4, b4, g4, be4,
     w5, b5) = params

    def lrelu(v):
        return jnp.where(v > 0, v, LRELU_SLOPE * v)

    def dot(h, w):
        return jnp.dot(h.astype(jnp.bfloat16).astype(jnp.float32),
                       w.astype(jnp.float32),
                       preferred_element_type=jnp.float32,
                       precision=jax.lax.Precision.HIGHEST)

    def bn(z, g, be):
        m = jnp.mean(z, axis=0, keepdims=True)
        v = jnp.maximum(jnp.mean(z * z, axis=0, keepdims=True) - m * m, 0.0)
        return (z - m) / jnp.sqrt(v + BN_EPS) * g + be

    B = x.shape[0]
    xp = jnp.zeros((B, D_IN_PAD), jnp.float32).at[:, :D_IN].set(x)
    h = lrelu(dot(xp, w1) + b1)
    h = lrelu(bn(dot(h, w2) + b2, g2, be2))
    h = lrelu(bn(dot(h, w3) + b3, g3, be3))
    h = lrelu(bn(dot(h, w4) + b4, g4, be4))
    out = jnp.tanh(dot(h, w5) + b5)
    return out[:, :n_features]


if __name__ == "__main__":
    B = 8
    N_FEATURES = 50  # GAN output dimensionality (matches data feature count)

    key = jax.random.PRNGKey(0)
    k_x, k_p = jax.random.split(key)
    x = jax.random.normal(k_x, (B, D_IN), jnp.float32)
    params = init_params(k_p, N_FEATURES)

    out = jax.block_until_ready(generator_forward(x, params, N_FEATURES))
    ref = generator_reference(x, params, N_FEATURES)

    assert out.shape == (B, N_FEATURES)
    assert jnp.allclose(out, ref, atol=2e-2, rtol=2e-2), "mismatch vs JAX reference"

    print("KERNEL_OK")
</pallas_src>

<mosaic_0001>
module attributes {stable_mosaic.version = 11 : i64} {
  func.func @generator_kernel(%arg0: memref<16x64xf32, #tpu.memory_space<vmem>>, %arg1: memref<64x128xbf16, #tpu.memory_space<vmem>>, %arg2: memref<1x128xf32, #tpu.memory_space<vmem>>, %arg3: memref<128x256xbf16, #tpu.memory_space<vmem>>, %arg4: memref<1x256xf32, #tpu.memory_space<vmem>>, %arg5: memref<1x256xf32, #tpu.memory_space<vmem>>, %arg6: memref<1x256xf32, #tpu.memory_space<vmem>>, %arg7: memref<256x512xbf16, #tpu.memory_space<vmem>>, %arg8: memref<1x512xf32, #tpu.memory_space<vmem>>, %arg9: memref<1x512xf32, #tpu.memory_space<vmem>>, %arg10: memref<1x512xf32, #tpu.memory_space<vmem>>, %arg11: memref<512x1024xbf16, #tpu.memory_space<any>>, %arg12: memref<1x1024xf32, #tpu.memory_space<vmem>>, %arg13: memref<1x1024xf32, #tpu.memory_space<vmem>>, %arg14: memref<1x1024xf32, #tpu.memory_space<vmem>>, %arg15: memref<1024x128xbf16, #tpu.memory_space<any>>, %arg16: memref<1x128xf32, #tpu.memory_space<vmem>>, %arg17: memref<16x128xf32, #tpu.memory_space<vmem>>, %arg18: memref<512x1024xbf16, #tpu.memory_space<vmem>>, %arg19: memref<1024x128xbf16, #tpu.memory_space<vmem>>, %arg20: memref<2x!tpu.dma_semaphore, #tpu.memory_space<semaphore_mem>>) attributes {dimension_semantics = [], scalar_prefetch = 0 : i64, scratch_operands = 3 : i64, tpu.core_type = #tpu.core_type<tc>} {
    %c0_i32 = arith.constant 0 : i32
    %0 = tpu.memref_slice %arg20[%c0_i32] : memref<2x!tpu.dma_semaphore, #tpu.memory_space<semaphore_mem>> -> memref<1x!tpu.dma_semaphore, #tpu.memory_space<semaphore_mem>>
    %1 = tpu.memref_squeeze %0 : memref<1x!tpu.dma_semaphore, #tpu.memory_space<semaphore_mem>> -> memref<!tpu.dma_semaphore, #tpu.memory_space<semaphore_mem>>
    tpu.enqueue_dma source(%arg11 : memref<512x1024xbf16, #tpu.memory_space<any>>) target(%arg18 : memref<512x1024xbf16, #tpu.memory_space<vmem>>) target_semaphore(%1 : memref<!tpu.dma_semaphore, #tpu.memory_space<semaphore_mem>>)
    %c1_i32 = arith.constant 1 : i32
    %2 = tpu.memref_slice %arg20[%c1_i32] : memref<2x!tpu.dma_semaphore, #tpu.memory_space<semaphore_mem>> -> memref<1x!tpu.dma_semaphore, #tpu.memory_space<semaphore_mem>>
    %3 = tpu.memref_squeeze %2 : memref<1x!tpu.dma_semaphore, #tpu.memory_space<semaphore_mem>> -> memref<!tpu.dma_semaphore, #tpu.memory_space<semaphore_mem>>
    tpu.enqueue_dma source(%arg15 : memref<1024x128xbf16, #tpu.memory_space<any>>) target(%arg19 : memref<1024x128xbf16, #tpu.memory_space<vmem>>) target_semaphore(%3 : memref<!tpu.dma_semaphore, #tpu.memory_space<semaphore_mem>>)
    %4 = tpu.iota {dimensions = array<i32: 0>} : vector<16x1xi32>
    %c8_i32 = arith.constant 8 : i32
    %5 = vector.broadcast %c8_i32 : i32 to vector<16x1xi32>
    %6 = arith.cmpi slt, %4, %5 : vector<16x1xi32>
    %7 = arith.extui %6 : vector<16x1xi1> to vector<16x1xi32>
    %8 = arith.sitofp %7 : vector<16x1xi32> to vector<16x1xf32>
    %c0 = arith.constant 0 : index
    %c0_0 = arith.constant 0 : index
    %9 = vector.load %arg0[%c0, %c0_0] : memref<16x64xf32, #tpu.memory_space<vmem>>, vector<16x64xf32>
    %10 = arith.truncf %9 : vector<16x64xf32> to vector<16x64xbf16>
    %c0_1 = arith.constant 0 : index
    %c0_2 = arith.constant 0 : index
    %11 = vector.load %arg1[%c0_1, %c0_2] : memref<64x128xbf16, #tpu.memory_space<vmem>>, vector<64x128xbf16>
    %cst = arith.constant dense<0.000000e+00> : vector<16x128xf32>
    %12 = tpu.matmul %10, %11, %cst {dimension_numbers = #tpu.dot_dimension_numbers<[1], [0], [0], [1], [0, 0, 1, 1], [], []>} : vector<16x64xbf16>, vector<64x128xbf16>, vector<16x128xf32> -> vector<16x128xf32>
    %c0_3 = arith.constant 0 : index
    %c0_4 = arith.constant 0 : index
    %13 = vector.load %arg2[%c0_3, %c0_4] : memref<1x128xf32, #tpu.memory_space<vmem>>, vector<1x128xf32>
    %14 = vector.broadcast %13 : vector<1x128xf32> to vector<16x128xf32>
    %15 = arith.addf %12, %14 : vector<16x128xf32>
    %cst_5 = arith.constant 0.000000e+00 : f32
    %16 = vector.broadcast %cst_5 : f32 to vector<16x128xf32>
    %17 = arith.cmpf ogt, %15, %16 : vector<16x128xf32>
    %cst_6 = arith.constant 2.000000e-01 : f32
    %18 = vector.broadcast %cst_6 : f32 to vector<16x128xf32>
    %19 = arith.mulf %18, %15 : vector<16x128xf32>
    %20 = arith.select %17, %15, %19 : vector<16x128xi1>, vector<16x128xf32>
    %21 = arith.truncf %20 : vector<16x128xf32> to vector<16x128xbf16>
    %c0_7 = arith.constant 0 : index
    %c0_8 = arith.constant 0 : index
    %22 = vector.load %arg3[%c0_7, %c0_8] : memref<128x256xbf16, #tpu.memory_space<vmem>>, vector<128x256xbf16>
    %cst_9 = arith.constant dense<0.000000e+00> : vector<16x256xf32>
    %23 = tpu.matmul %21, %22, %cst_9 {dimension_numbers = #tpu.dot_dimension_numbers<[1], [0], [0], [1], [0, 0, 1, 1], [], []>} : vector<16x128xbf16>, vector<128x256xbf16>, vector<16x256xf32> -> vector<16x256xf32>
    %c0_10 = arith.constant 0 : index
    %c0_11 = arith.constant 0 : index
    %24 = vector.load %arg4[%c0_10, %c0_11] : memref<1x256xf32, #tpu.memory_space<vmem>>, vector<1x256xf32>
    %25 = vector.broadcast %24 : vector<1x256xf32> to vector<16x256xf32>
    %26 = arith.addf %23, %25 : vector<16x256xf32>
    %27 = vector.broadcast %8 : vector<16x1xf32> to vector<16x256xf32>
    %28 = arith.mulf %26, %27 : vector<16x256xf32>
    %cst_12 = arith.constant dense<0.000000e+00> : vector<256xf32>
    %29 = vector.multi_reduction <add>, %28, %cst_12 [0] : vector<16x256xf32> to vector<256xf32>
    %30 = vector.shape_cast %29 : vector<256xf32> to vector<1x256xf32>
    %cst_13 = arith.constant 1.250000e-01 : f32
    %31 = vector.broadcast %cst_13 : f32 to vector<1x256xf32>
    %32 = arith.mulf %30, %31 : vector<1x256xf32>
    %33 = arith.mulf %28, %28 : vector<16x256xf32>
    %cst_14 = arith.constant dense<0.000000e+00> : vector<256xf32>
    %34 = vector.multi_reduction <add>, %33, %cst_14 [0] : vector<16x256xf32> to vector<256xf32>
    %35 = vector.shape_cast %34 : vector<256xf32> to vector<1x256xf32>
    %cst_15 = arith.constant 1.250000e-01 : f32
    %36 = vector.broadcast %cst_15 : f32 to vector<1x256xf32>
    %37 = arith.mulf %35, %36 : vector<1x256xf32>
    %38 = arith.mulf %32, %32 : vector<1x256xf32>
    %39 = arith.subf %37, %38 : vector<1x256xf32>
    %cst_16 = arith.constant 0.000000e+00 : f32
    %40 = vector.broadcast %cst_16 : f32 to vector<1x256xf32>
    %41 = arith.maximumf %39, %40 : vector<1x256xf32>
    %c0_17 = arith.constant 0 : index
    %c0_18 = arith.constant 0 : index
    %42 = vector.load %arg5[%c0_17, %c0_18] : memref<1x256xf32, #tpu.memory_space<vmem>>, vector<1x256xf32>
    %cst_19 = arith.constant 8.000000e-01 : f32
    %43 = vector.broadcast %cst_19 : f32 to vector<1x256xf32>
    %44 = arith.addf %41, %43 : vector<1x256xf32>
    %45 = math.rsqrt %44 : vector<1x256xf32>
    %46 = arith.mulf %42, %45 : vector<1x256xf32>
    %c0_20 = arith.constant 0 : index
    %c0_21 = arith.constant 0 : index
    %47 = vector.load %arg6[%c0_20, %c0_21] : memref<1x256xf32, #tpu.memory_space<vmem>>, vector<1x256xf32>
    %48 = arith.mulf %32, %46 : vector<1x256xf32>
    %49 = arith.subf %47, %48 : vector<1x256xf32>
    %50 = vector.broadcast %46 : vector<1x256xf32> to vector<16x256xf32>
    %51 = arith.mulf %26, %50 : vector<16x256xf32>
    %52 = vector.broadcast %49 : vector<1x256xf32> to vector<16x256xf32>
    %53 = arith.addf %51, %52 : vector<16x256xf32>
    %cst_22 = arith.constant 0.000000e+00 : f32
    %54 = vector.broadcast %cst_22 : f32 to vector<16x256xf32>
    %55 = arith.cmpf ogt, %53, %54 : vector<16x256xf32>
    %cst_23 = arith.constant 2.000000e-01 : f32
    %56 = vector.broadcast %cst_23 : f32 to vector<16x256xf32>
    %57 = arith.mulf %56, %53 : vector<16x256xf32>
    %58 = arith.select %55, %53, %57 : vector<16x256xi1>, vector<16x256xf32>
    %59 = arith.truncf %58 : vector<16x256xf32> to vector<16x256xbf16>
    %c0_24 = arith.constant 0 : index
    %c0_25 = arith.constant 0 : index
    %60 = vector.load %arg7[%c0_24, %c0_25] : memref<256x512xbf16, #tpu.memory_space<vmem>>, vector<256x512xbf16>
    %cst_26 = arith.constant dense<0.000000e+00> : vector<16x512xf32>
    %61 = tpu.matmul %59, %60, %cst_26 {dimension_numbers = #tpu.dot_dimension_numbers<[1], [0], [0], [1], [0, 0, 1, 1], [], []>} : vector<16x256xbf16>, vector<256x512xbf16>, vector<16x512xf32> -> vector<16x512xf32>
    %c0_27 = arith.constant 0 : index
    %c0_28 = arith.constant 0 : index
    %62 = vector.load %arg8[%c0_27, %c0_28] : memref<1x512xf32, #tpu.memory_space<vmem>>, vector<1x512xf32>
    %63 = vector.broadcast %62 : vector<1x512xf32> to vector<16x512xf32>
    %64 = arith.addf %61, %63 : vector<16x512xf32>
    %65 = vector.broadcast %8 : vector<16x1xf32> to vector<16x512xf32>
    %66 = arith.mulf %64, %65 : vector<16x512xf32>
    %cst_29 = arith.constant dense<0.000000e+00> : vector<512xf32>
    %67 = vector.multi_reduction <add>, %66, %cst_29 [0] : vector<16x512xf32> to vector<512xf32>
    %68 = vector.shape_cast %67 : vector<512xf32> to vector<1x512xf32>
    %cst_30 = arith.constant 1.250000e-01 : f32
    %69 = vector.broadcast %cst_30 : f32 to vector<1x512xf32>
    %70 = arith.mulf %68, %69 : vector<1x512xf32>
    %71 = arith.mulf %66, %66 : vector<16x512xf32>
    %cst_31 = arith.constant dense<0.000000e+00> : vector<512xf32>
    %72 = vector.multi_reduction <add>, %71, %cst_31 [0] : vector<16x512xf32> to vector<512xf32>
    %73 = vector.shape_cast %72 : vector<512xf32> to vector<1x512xf32>
    %cst_32 = arith.constant 1.250000e-01 : f32
    %74 = vector.broadcast %cst_32 : f32 to vector<1x512xf32>
    %75 = arith.mulf %73, %74 : vector<1x512xf32>
    %76 = arith.mulf %70, %70 : vector<1x512xf32>
    %77 = arith.subf %75, %76 : vector<1x512xf32>
    %cst_33 = arith.constant 0.000000e+00 : f32
    %78 = vector.broadcast %cst_33 : f32 to vector<1x512xf32>
    %79 = arith.maximumf %77, %78 : vector<1x512xf32>
    %c0_34 = arith.constant 0 : index
    %c0_35 = arith.constant 0 : index
    %80 = vector.load %arg9[%c0_34, %c0_35] : memref<1x512xf32, #tpu.memory_space<vmem>>, vector<1x512xf32>
    %cst_36 = arith.constant 8.000000e-01 : f32
    %81 = vector.broadcast %cst_36 : f32 to vector<1x512xf32>
    %82 = arith.addf %79, %81 : vector<1x512xf32>
    %83 = math.rsqrt %82 : vector<1x512xf32>
    %84 = arith.mulf %80, %83 : vector<1x512xf32>
    %c0_37 = arith.constant 0 : index
    %c0_38 = arith.constant 0 : index
    %85 = vector.load %arg10[%c0_37, %c0_38] : memref<1x512xf32, #tpu.memory_space<vmem>>, vector<1x512xf32>
    %86 = arith.mulf %70, %84 : vector<1x512xf32>
    %87 = arith.subf %85, %86 : vector<1x512xf32>
    %88 = vector.broadcast %84 : vector<1x512xf32> to vector<16x512xf32>
    %89 = arith.mulf %64, %88 : vector<16x512xf32>
    %90 = vector.broadcast %87 : vector<1x512xf32> to vector<16x512xf32>
    %91 = arith.addf %89, %90 : vector<16x512xf32>
    %cst_39 = arith.constant 0.000000e+00 : f32
    %92 = vector.broadcast %cst_39 : f32 to vector<16x512xf32>
    %93 = arith.cmpf ogt, %91, %92 : vector<16x512xf32>
    %cst_40 = arith.constant 2.000000e-01 : f32
    %94 = vector.broadcast %cst_40 : f32 to vector<16x512xf32>
    %95 = arith.mulf %94, %91 : vector<16x512xf32>
    %96 = arith.select %93, %91, %95 : vector<16x512xi1>, vector<16x512xf32>
    %c0_i32_41 = arith.constant 0 : i32
    %97 = tpu.memref_slice %arg20[%c0_i32_41] : memref<2x!tpu.dma_semaphore, #tpu.memory_space<semaphore_mem>> -> memref<1x!tpu.dma_semaphore, #tpu.memory_space<semaphore_mem>>
    %98 = tpu.memref_squeeze %97 : memref<1x!tpu.dma_semaphore, #tpu.memory_space<semaphore_mem>> -> memref<!tpu.dma_semaphore, #tpu.memory_space<semaphore_mem>>
    tpu.wait_dma2 semaphore(%98 : memref<!tpu.dma_semaphore, #tpu.memory_space<semaphore_mem>>) src(%arg11 : memref<512x1024xbf16, #tpu.memory_space<any>>) dst(%arg18 : memref<512x1024xbf16, #tpu.memory_space<vmem>>)
    %99 = arith.truncf %96 : vector<16x512xf32> to vector<16x512xbf16>
    %c0_42 = arith.constant 0 : index
    %c0_43 = arith.constant 0 : index
    %100 = vector.load %arg18[%c0_42, %c0_43] : memref<512x1024xbf16, #tpu.memory_space<vmem>>, vector<512x1024xbf16>
    %cst_44 = arith.constant dense<0.000000e+00> : vector<16x1024xf32>
    %101 = tpu.matmul %99, %100, %cst_44 {dimension_numbers = #tpu.dot_dimension_numbers<[1], [0], [0], [1], [0, 0, 1, 1], [], []>} : vector<16x512xbf16>, vector<512x1024xbf16>, vector<16x1024xf32> -> vector<16x1024xf32>
    %c0_45 = arith.constant 0 : index
    %c0_46 = arith.constant 0 : index
    %102 = vector.load %arg12[%c0_45, %c0_46] : memref<1x1024xf32, #tpu.memory_space<vmem>>, vector<1x1024xf32>
    %103 = vector.broadcast %102 : vector<1x1024xf32> to vector<16x1024xf32>
    %104 = arith.addf %101, %103 : vector<16x1024xf32>
    %105 = vector.broadcast %8 : vector<16x1xf32> to vector<16x1024xf32>
    %106 = arith.mulf %104, %105 : vector<16x1024xf32>
    %cst_47 = arith.constant dense<0.000000e+00> : vector<1024xf32>
    %107 = vector.multi_reduction <add>, %106, %cst_47 [0] : vector<16x1024xf32> to vector<1024xf32>
    %108 = vector.shape_cast %107 : vector<1024xf32> to vector<1x1024xf32>
    %cst_48 = arith.constant 1.250000e-01 : f32
    %109 = vector.broadcast %cst_48 : f32 to vector<1x1024xf32>
    %110 = arith.mulf %108, %109 : vector<1x1024xf32>
    %111 = arith.mulf %106, %106 : vector<16x1024xf32>
    %cst_49 = arith.constant dense<0.000000e+00> : vector<1024xf32>
    %112 = vector.multi_reduction <add>, %111, %cst_49 [0] : vector<16x1024xf32> to vector<1024xf32>
    %113 = vector.shape_cast %112 : vector<1024xf32> to vector<1x1024xf32>
    %cst_50 = arith.constant 1.250000e-01 : f32
    %114 = vector.broadcast %cst_50 : f32 to vector<1x1024xf32>
    %115 = arith.mulf %113, %114 : vector<1x1024xf32>
    %116 = arith.mulf %110, %110 : vector<1x1024xf32>
    %117 = arith.subf %115, %116 : vector<1x1024xf32>
    %cst_51 = arith.constant 0.000000e+00 : f32
    %118 = vector.broadcast %cst_51 : f32 to vector<1x1024xf32>
    %119 = arith.maximumf %117, %118 : vector<1x1024xf32>
    %c0_52 = arith.constant 0 : index
    %c0_53 = arith.constant 0 : index
    %120 = vector.load %arg13[%c0_52, %c0_53] : memref<1x1024xf32, #tpu.memory_space<vmem>>, vector<1x1024xf32>
    %cst_54 = arith.constant 8.000000e-01 : f32
    %121 = vector.broadcast %cst_54 : f32 to vector<1x1024xf32>
    %122 = arith.addf %119, %121 : vector<1x1024xf32>
    %123 = math.rsqrt %122 : vector<1x1024xf32>
    %124 = arith.mulf %120, %123 : vector<1x1024xf32>
    %c0_55 = arith.constant 0 : index
    %c0_56 = arith.constant 0 : index
    %125 = vector.load %arg14[%c0_55, %c0_56] : memref<1x1024xf32, #tpu.memory_space<vmem>>, vector<1x1024xf32>
    %126 = arith.mulf %110, %124 : vector<1x1024xf32>
    %127 = arith.subf %125, %126 : vector<1x1024xf32>
    %128 = vector.broadcast %124 : vector<1x1024xf32> to vector<16x1024xf32>
    %129 = arith.mulf %104, %128 : vector<16x1024xf32>
    %130 = vector.broadcast %127 : vector<1x1024xf32> to vector<16x1024xf32>
    %131 = arith.addf %129, %130 : vector<16x1024xf32>
    %cst_57 = arith.constant 0.000000e+00 : f32
    %132 = vector.broadcast %cst_57 : f32 to vector<16x1024xf32>
    %133 = arith.cmpf ogt, %131, %132 : vector<16x1024xf32>
    %cst_58 = arith.constant 2.000000e-01 : f32
    %134 = vector.broadcast %cst_58 : f32 to vector<16x1024xf32>
    %135 = arith.mulf %134, %131 : vector<16x1024xf32>
    %136 = arith.select %133, %131, %135 : vector<16x1024xi1>, vector<16x1024xf32>
    %c1_i32_59 = arith.constant 1 : i32
    %137 = tpu.memref_slice %arg20[%c1_i32_59] : memref<2x!tpu.dma_semaphore, #tpu.memory_space<semaphore_mem>> -> memref<1x!tpu.dma_semaphore, #tpu.memory_space<semaphore_mem>>
    %138 = tpu.memref_squeeze %137 : memref<1x!tpu.dma_semaphore, #tpu.memory_space<semaphore_mem>> -> memref<!tpu.dma_semaphore, #tpu.memory_space<semaphore_mem>>
    tpu.wait_dma2 semaphore(%138 : memref<!tpu.dma_semaphore, #tpu.memory_space<semaphore_mem>>) src(%arg15 : memref<1024x128xbf16, #tpu.memory_space<any>>) dst(%arg19 : memref<1024x128xbf16, #tpu.memory_space<vmem>>)
    %139 = arith.truncf %136 : vector<16x1024xf32> to vector<16x1024xbf16>
    %c0_60 = arith.constant 0 : index
    %c0_61 = arith.constant 0 : index
    %140 = vector.load %arg19[%c0_60, %c0_61] : memref<1024x128xbf16, #tpu.memory_space<vmem>>, vector<1024x128xbf16>
    %cst_62 = arith.constant dense<0.000000e+00> : vector<16x128xf32>
    %141 = tpu.matmul %139, %140, %cst_62 {dimension_numbers = #tpu.dot_dimension_numbers<[1], [0], [0], [1], [0, 0, 1, 1], [], []>} : vector<16x1024xbf16>, vector<1024x128xbf16>, vector<16x128xf32> -> vector<16x128xf32>
    %c0_63 = arith.constant 0 : index
    %c0_64 = arith.constant 0 : index
    %142 = vector.load %arg16[%c0_63, %c0_64] : memref<1x128xf32, #tpu.memory_space<vmem>>, vector<1x128xf32>
    %143 = vector.broadcast %142 : vector<1x128xf32> to vector<16x128xf32>
    %144 = arith.addf %141, %143 : vector<16x128xf32>
    %145 = math.tanh %144 : vector<16x128xf32>
    %c0_65 = arith.constant 0 : index
    %c0_66 = arith.constant 0 : index
    %146 = vector.load %arg17[%c0_65, %c0_66] : memref<16x128xf32, #tpu.memory_space<vmem>>, vector<16x128xf32>
    tpu.vector_store %arg17[%c0_65, %c0_66], %145 {strides = array<i32>} : memref<16x128xf32, #tpu.memory_space<vmem>>, vector<16x128xf32>,
    return
  }
}

</mosaic_0001>

<llo_original>
// kernel: tpu_custom_call.1
$region0: #{tpu_custom_call.1}
  #allocation0 [shape = 'u32[]', space=smem, size = 0x4, offset = 0x4, fixed_abs, tag = 'smem constant byte address 0x4 - core index']
  #allocation1 [shape = 'u32[144,128]{1,0:T(1,128)}', space=vmem, size = 0x12000, scoped, tag = 'internal scratch']
  #allocation2 [shape = 'bf16[512,1024]{1,0:T(16,128)(2,1)}', space=vmem, size = 0x100000, scoped, tag = 'scratch operand']
  #allocation3 [shape = 'bf16[1024,128]{1,0:T(16,128)(2,1)}', space=vmem, size = 0x40000, scoped, tag = 'scratch operand']
  #allocation4 [shape = 's32[2]{0}', space=sflag, size = 0x8, scoped, tag = 'scratch operand']
  #allocation18 [shape = 's32[]', space=sflag, size = 0x4, offset = 0, fixed_abs, tag = 'sflag constant byte address 0x0 - dummy sync flag']
  #allocation20 [shape = 's32[]', space=sflag, size = 0x4, offset = 0, fixed_abs, tag = 'sflag constant byte address 0x0 - dummy sync flag']
  #allocation21 [shape = 's32[]', space=sflag, size = 0x4, offset = 0, fixed_abs, tag = 'sflag constant byte address 0x0 - dummy sync flag']
  #allocation22 [shape = 'u32[]', space=smem, size = 0x4, offset = 0x44, fixed_abs, tag = 'smem constant byte address 0x44 - assertion arg 0']
  #allocation23 [shape = 'u32[]', space=smem, size = 0x4, offset = 0x48, fixed_abs, tag = 'smem constant byte address 0x48 - assertion arg 1']
  %s0 = inlined_call_operand.hbm [shape: f32[16,64], index: 0, kind: input, shape index: {}]
  %s1 = inlined_call_operand.hbm [shape: bf16[64,128], index: 1, kind: input, shape index: {}]
  %s2 = inlined_call_operand.vmem [shape: f32[1,128], index: 2, kind: input, shape index: {}]
  %s3 = inlined_call_operand.hbm [shape: bf16[128,256], index: 3, kind: input, shape index: {}]
  %s4 = inlined_call_operand.hbm [shape: f32[1,256], index: 4, kind: input, shape index: {}]
  %s5 = inlined_call_operand.hbm [shape: f32[1,256], index: 5, kind: input, shape index: {}]
  %s6 = inlined_call_operand.hbm [shape: f32[1,256], index: 6, kind: input, shape index: {}]
  %s7 = inlined_call_operand.hbm [shape: bf16[256,512], index: 7, kind: input, shape index: {}]
  %s8 = inlined_call_operand.vmem [shape: f32[1,512], index: 8, kind: input, shape index: {}]
  %s9 = inlined_call_operand.vmem [shape: f32[1,512], index: 9, kind: input, shape index: {}]
  %s10 = inlined_call_operand.vmem [shape: f32[1,512], index: 10, kind: input, shape index: {}]
  %s11 = inlined_call_operand.hbm [shape: bf16[512,1024], index: 11, kind: input, shape index: {}]
  %s12 = inlined_call_operand.vmem [shape: f32[1,1024], index: 12, kind: input, shape index: {}]
  %s13 = inlined_call_operand.vmem [shape: f32[1,1024], index: 13, kind: input, shape index: {}]
  %s14 = inlined_call_operand.vmem [shape: f32[1,1024], index: 14, kind: input, shape index: {}]
  %s15 = inlined_call_operand.hbm [shape: bf16[1024,128], index: 15, kind: input, shape index: {}]
  %s16 = inlined_call_operand.vmem [shape: f32[1,128], index: 16, kind: input, shape index: {}]
  %s17 = inlined_call_operand.hbm [shape: f32[16,128], index: 17, kind: output, shape index: {}]
  %s18 = sld [smem:[#allocation0]]
  $region102: #{tpu_custom_call.1} parent=0
    _
  %s20 = ssub.s32 1, %s18
  %s21 = scalar_select 0, %s20, %s18
  $region1: #{tpu_custom_call.1} parent=0
    #allocation5 [shape = 'u8[8192]{0}', space=vmem, size = 0x2000, scoped, tag = 'input window, operand 0, single buffered']
    #allocation6 [shape = 's32[1]{0}', space=sflag, size = 0x4, scoped, tag = 'scoped memory for tpu_custom_call.1']
    #allocation7 [shape = 's32[1]{0}', space=sflag, size = 0x4, scoped, tag = 'scoped memory for tpu_custom_call.1']
    #allocation8 [shape = 'u8[16384]{0}', space=vmem, size = 0x4000, scoped, tag = 'input window, operand 1, single buffered']
    #allocation9 [shape = 's32[1]{0}', space=sflag, size = 0x4, scoped, tag = 'scoped memory for tpu_custom_call.1']
    #allocation10 [shape = 'u8[65536]{0}', space=vmem, size = 0x10000, scoped, tag = 'input window, operand 3, single buffered']
    #allocation11 [shape = 'u8[1024]{0}', space=vmem, size = 0x400, scoped, tag = 'input window, operand 4, single buffered']
    #allocation12 [shape = 's32[1]{0}', space=sflag, size = 0x4, scoped, tag = 'scoped memory for tpu_custom_call.1']
    #allocation13 [shape = 'u8[1024]{0}', space=vmem, size = 0x400, scoped, tag = 'input window, operand 5, single buffered']
    #allocation14 [shape = 'u8[1024]{0}', space=vmem, size = 0x400, scoped, tag = 'input window, operand 6, single buffered']
    #allocation15 [shape = 's32[1]{0}', space=sflag, size = 0x4, scoped, tag = 'scoped memory for tpu_custom_call.1']
    #allocation16 [shape = 'u8[262144]{0}', space=vmem, size = 0x40000, scoped, tag = 'input window, operand 7, single buffered']
    #allocation17 [shape = 'u8[8192]{0}', space=vmem, size = 0x2000, scoped, tag = 'output window, operand 0, single buffered']
    #allocation19 [shape = 'u32[9]{0}', space=smem, size = 0x24, scoped, tag = 'DMA stride descriptor']
    %22 = vsyncpa [#allocation6], 0
    %23 = vsyncpa [#allocation9], 0
    %24 = vsyncpa [#allocation12], 0
    %25 = vsyncpa [#allocation15], 0
    %26 = vsyncpa [#allocation7], 0
    // Predicated region
    $region2: #{tpu_custom_call.1} parent=1 // pred_check
      _
    $region3: #{tpu_custom_call.1} parent=1 // pred_check_branch
      %28 = sbr.rel (0) target = $region5
    $region4: #{tpu_custom_call.1} parent=1 // pred_region
      %s30 = ssub.s32 256, 256
      %31 = vsyncadd [#allocation6], %s30
      %s32 = sshll.u32 [#allocation5], 4
      %s33 = int_to_ptr.vmem [resolvable:$true] %s32
      %38 = dma.hbm_to_vmem [thread:$0]  %s0, 256, %s33, [#allocation6], 128, 128, 8
    $region5: #{tpu_custom_call.1} parent=1 // pred_fallthru
      _
    // Predicated region
    $region6: #{tpu_custom_call.1} parent=1 // pred_check
      _
    $region7: #{tpu_custom_call.1} parent=1 // pred_check_branch
      %40 = sbr.rel (0) target = $region9
    $region8: #{tpu_custom_call.1} parent=1 // pred_region
      %s42 = ssub.s32 512, 512
      %43 = vsyncadd [#allocation9], %s42
      %s44 = sshll.u32 [#allocation8], 4
      %s45 = int_to_ptr.vmem [resolvable:$true] %s44
      %50 = dma.hbm_to_vmem [thread:$0]  %s1, 512, %s45, [#allocation9], 64, 64, 4
    $region9: #{tpu_custom_call.1} parent=1 // pred_fallthru
      _
    // Predicated region
    $region10: #{tpu_custom_call.1} parent=1 // pred_check
      _
    $region11: #{tpu_custom_call.1} parent=1 // pred_check_branch
      %52 = sbr.rel (0) target = $region13
    $region12: #{tpu_custom_call.1} parent=1 // pred_region
      _
    $region13: #{tpu_custom_call.1} parent=1 // pred_fallthru
      _
    // Predicated region
    $region14: #{tpu_custom_call.1} parent=1 // pred_check
      _
    $region15: #{tpu_custom_call.1} parent=1 // pred_check_branch
      %54 = sbr.rel (0) target = $region17
    $region16: #{tpu_custom_call.1} parent=1 // pred_region
      %s56 = ssub.s32 2048, 2048
      %57 = vsyncadd [#allocation9], %s56
      %s58 = sshll.u32 [#allocation10], 4
      %s59 = int_to_ptr.vmem [resolvable:$true] %s58
      %64 = dma.hbm_to_vmem [thread:$0]  %s3, 2048, %s59, [#allocation9], 128, 128, 8
    $region17: #{tpu_custom_call.1} parent=1 // pred_fallthru
      _
    // Predicated region
    $region18: #{tpu_custom_call.1} parent=1 // pred_check
      _
    $region19: #{tpu_custom_call.1} parent=1 // pred_check_branch
      %66 = sbr.rel (0) target = $region21
    $region20: #{tpu_custom_call.1} parent=1 // pred_region
      %s68 = ssub.s32 32, 32
      %69 = vsyncadd [#allocation12], %s68
      %s71 = sshll.u32 [#allocation11], 4
      %s72 = int_to_ptr.vmem [resolvable:$true] %s71
      %74 = dma.hbm_to_vmem [thread:$0]  %s4, 32, %s72, [#allocation12]
    $region21: #{tpu_custom_call.1} parent=1 // pred_fallthru
      _
    // Predicated region
    $region22: #{tpu_custom_call.1} parent=1 // pred_check
      _
    $region23: #{tpu_custom_call.1} parent=1 // pred_check_branch
      %76 = sbr.rel (0) target = $region25
    $region24: #{tpu_custom_call.1} parent=1 // pred_region
      %s78 = ssub.s32 32, 32
      %79 = vsyncadd [#allocation12], %s78
      %s81 = sshll.u32 [#allocation13], 4
      %s82 = int_to_ptr.vmem [resolvable:$true] %s81
      %84 = dma.hbm_to_vmem [thread:$0]  %s5, 32, %s82, [#allocation12]
    $region25: #{tpu_custom_call.1} parent=1 // pred_fallthru
      _
    // Predicated region
    $region26: #{tpu_custom_call.1} parent=1 // pred_check
      _
    $region27: #{tpu_custom_call.1} parent=1 // pred_check_branch
      %86 = sbr.rel (0) target = $region29
    $region28: #{tpu_custom_call.1} parent=1 // pred_region
      %s88 = ssub.s32 32, 32
      %89 = vsyncadd [#allocation15], %s88
      %s91 = sshll.u32 [#allocation14], 4
      %s92 = int_to_ptr.vmem [resolvable:$true] %s91
      %94 = dma.hbm_to_vmem [thread:$0]  %s6, 32, %s92, [#allocation15]
    $region29: #{tpu_custom_call.1} parent=1 // pred_fallthru
      _
    // Predicated region
    $region30: #{tpu_custom_call.1} parent=1 // pred_check
      _
    $region31: #{tpu_custom_call.1} parent=1 // pred_check_branch
      %96 = sbr.rel (0) target = $region33
    $region32: #{tpu_custom_call.1} parent=1 // pred_region
      %s98 = ssub.s32 8192, 8192
      %99 = vsyncadd [#allocation15], %s98
      %s100 = sshll.u32 [#allocation16], 4
      %s101 = int_to_ptr.vmem [resolvable:$true] %s100
      %106 = dma.hbm_to_vmem [thread:$0]  %s7, 8192, %s101, [#allocation15], 256, 256, 16
    $region33: #{tpu_custom_call.1} parent=1 // pred_fallthru
      _
    // Predicated region
    $region34: #{tpu_custom_call.1} parent=1 // pred_check
      _
    $region35: #{tpu_custom_call.1} parent=1 // pred_check_branch
      %108 = sbr.rel (0) target = $region37
    $region36: #{tpu_custom_call.1} parent=1 // pred_region
      _
    $region37: #{tpu_custom_call.1} parent=1 // pred_fallthru
      _
    // Predicated region
    $region38: #{tpu_custom_call.1} parent=1 // pred_check
      _
    $region39: #{tpu_custom_call.1} parent=1 // pred_check_branch
      %110 = sbr.rel (0) target = $region41
    $region40: #{tpu_custom_call.1} parent=1 // pred_region
      _
    $region41: #{tpu_custom_call.1} parent=1 // pred_fallthru
      _
    // Predicated region
    $region42: #{tpu_custom_call.1} parent=1 // pred_check
      _
    $region43: #{tpu_custom_call.1} parent=1 // pred_check_branch
      %112 = sbr.rel (0) target = $region45
    $region44: #{tpu_custom_call.1} parent=1 // pred_region
      _
    $region45: #{tpu_custom_call.1} parent=1 // pred_fallthru
      _
    // Predicated region
    $region46: #{tpu_custom_call.1} parent=1 // pred_check
      _
    $region47: #{tpu_custom_call.1} parent=1 // pred_check_branch
      %114 = sbr.rel (0) target = $region49
    $region48: #{tpu_custom_call.1} parent=1 // pred_region
      _
    $region49: #{tpu_custom_call.1} parent=1 // pred_fallthru
      _
    // Predicated region
    $region50: #{tpu_custom_call.1} parent=1 // pred_check
      _
    $region51: #{tpu_custom_call.1} parent=1 // pred_check_branch
      %116 = sbr.rel (0) target = $region53
    $region52: #{tpu_custom_call.1} parent=1 // pred_region
      _
    $region53: #{tpu_custom_call.1} parent=1 // pred_fallthru
      _
    // Predicated region
    $region54: #{tpu_custom_call.1} parent=1 // pred_check
      _
    $region55: #{tpu_custom_call.1} parent=1 // pred_check_branch
      %118 = sbr.rel (0) target = $region57
    $region56: #{tpu_custom_call.1} parent=1 // pred_region
      _
    $region57: #{tpu_custom_call.1} parent=1 // pred_fallthru
      _
    // Predicated region
    $region58: #{tpu_custom_call.1} parent=1 // pred_check
      _
    $region59: #{tpu_custom_call.1} parent=1 // pred_check_branch
      %120 = sbr.rel (0) target = $region61
    $region60: #{tpu_custom_call.1} parent=1 // pred_region
      _
    $region61: #{tpu_custom_call.1} parent=1 // pred_fallthru
      _
    // Predicated region
    $region62: #{tpu_custom_call.1} parent=1 // pred_check
      _
    $region63: #{tpu_custom_call.1} parent=1 // pred_check_branch
      %122 = sbr.rel (0) target = $region65
    $region64: #{tpu_custom_call.1} parent=1 // pred_region
      %123 = dma.done [#allocation6], 256
    $region65: #{tpu_custom_call.1} parent=1 // pred_fallthru
      _
    // Predicated region
    $region66: #{tpu_custom_call.1} parent=1 // pred_check
      _
    $region67: #{tpu_custom_call.1} parent=1 // pred_check_branch
      %125 = sbr.rel (0) target = $region69
    $region68: #{tpu_custom_call.1} parent=1 // pred_region
      %126 = dma.done [#allocation9], 512
    $region69: #{tpu_custom_call.1} parent=1 // pred_fallthru
      _
    // Predicated region
    $region70: #{tpu_custom_call.1} parent=1 // pred_check
      _
    $region71: #{tpu_custom_call.1} parent=1 // pred_check_branch
      %128 = sbr.rel (0) target = $region73
    $region72: #{tpu_custom_call.1} parent=1 // pred_region
      %129 = dma.done [#allocation9], 2048
    $region73: #{tpu_custom_call.1} parent=1 // pred_fallthru
      _
    // Predicated region
    $region74: #{tpu_custom_call.1} parent=1 // pred_check
      _
    $region75: #{tpu_custom_call.1} parent=1 // pred_check_branch
      %131 = sbr.rel (0) target = $region77
    $region76: #{tpu_custom_call.1} parent=1 // pred_region
      %132 = dma.done [#allocation12], 32
    $region77: #{tpu_custom_call.1} parent=1 // pred_fallthru
      _
    // Predicated region
    $region78: #{tpu_custom_call.1} parent=1 // pred_check
      _
    $region79: #{tpu_custom_call.1} parent=1 // pred_check_branch
      %134 = sbr.rel (0) target = $region81
    $region80: #{tpu_custom_call.1} parent=1 // pred_region
      %135 = dma.done [#allocation12], 32
    $region81: #{tpu_custom_call.1} parent=1 // pred_fallthru
      _
    // Predicated region
    $region82: #{tpu_custom_call.1} parent=1 // pred_check
      _
    $region83: #{tpu_custom_call.1} parent=1 // pred_check_branch
      %137 = sbr.rel (0) target = $region85
    $region84: #{tpu_custom_call.1} parent=1 // pred_region
      %138 = dma.done [#allocation15], 32
    $region85: #{tpu_custom_call.1} parent=1 // pred_fallthru
      _
    // Predicated region
    $region86: #{tpu_custom_call.1} parent=1 // pred_check
      _
    $region87: #{tpu_custom_call.1} parent=1 // pred_check_branch
      %140 = sbr.rel (0) target = $region89
    $region88: #{tpu_custom_call.1} parent=1 // pred_region
      %141 = dma.done [#allocation15], 8192
    $region89: #{tpu_custom_call.1} parent=1 // pred_fallthru
      _
    %s144 = sshll.u32 1, 14
    %s145 = sxor.u32 4294967295, %s144
    %s147 = sld [smem:[#allocation0]]
    %s148 = sadd.s32 2, %s147
    %s150 = sshll.u32 7, 26
    %s151 = sxor.u32 4294967295, %s150
    %s152 = sand.u32 0, %s151
    %s153 = sshll.u32 %s148, 26
    %s154 = sor.u32 %s152, %s153
    %s155 = sshll.u32 [#allocation2], 4
    %s156 = int_to_ptr.vmem [resolvable:$true] %s155
    %159 = sst [smem:[#allocation19]] 1024
    %s160 = scalar_lea.smem [#allocation19], 1
    %161 = sst [smem:[%s160]] 1024
    %s162 = scalar_lea.smem [#allocation19], 2
    %163 = sst [smem:[%s162]] 8
    %s164 = scalar_lea.smem [#allocation19], 3
    %165 = sst [smem:[%s164]] 64
    %s166 = scalar_lea.smem [#allocation19], 4
    %167 = sst [smem:[%s166]] 128
    %s168 = scalar_lea.smem [#allocation19], 5
    %169 = sst [smem:[%s168]] 2
    %s170 = scalar_lea.smem [#allocation19], 6
    %171 = sst [smem:[%s170]] 512
    %s172 = scalar_lea.smem [#allocation19], 7
    %173 = sst [smem:[%s172]] 64
    %s174 = scalar_lea.smem [#allocation19], 8
    %175 = sst [smem:[%s174]] 4
    %177 = dma.general %s11, 32768, %s156, [#allocation4], [#allocation18], [#allocation19], %s154, 0
    %s178 = scalar_lea.sflag [#allocation4], 1
    // Predicated region
    $region90: #{tpu_custom_call.1} parent=1 // pred_check
      _
    $region91: #{tpu_custom_call.1} parent=1 // pred_check_branch
      %180 = sbr.rel target = $region93
    $region92: #{tpu_custom_call.1} parent=1 // pred_region
      %181 = sst [smem:[#allocation22]] [#allocation21]
      %182 = sst [smem:[#allocation23]] [#allocation20]
    $region93: #{tpu_custom_call.1} parent=1 // pred_fallthru
      _
    %184 = shalt.err (0)
    %s186 = sshll.u32 [#allocation3], 4
    %s187 = int_to_ptr.vmem [resolvable:$true] %s186
    %189 = dma.hbm_to_vmem [thread:$0]  %s15, 8192, %s187, %s178
    %v190 = vlaneseq
    %v191 = vshrl.u32 %v190, 7
    %v192 = vadd.s32 %v191, 8
    %vm193 = vcmp.lt.s32.totalorder %v191, 8
    %vm194 = vcmp.lt.s32.totalorder %v192, 8
    %v195 = vsel %vm193, 1, 0
    %v196 = vsel %vm194, 1, 0
    %v197 = vcvt.s32.f32 %v195
    %v198 = vcvt.s32.f32 %v196
    %v199 = vld [vmem:[#allocation5] sm:$0xff]
    %v200 = vld [vmem:[#allocation5 + $0x8] sm:$0xff]
    %v201 = vpack.c.bf16 %v200, %v199
    %v202 = vld [vmem:[#allocation8] sm:$0xf]
    %v203 = vld [vmem:[#allocation8 + $0x4] sm:$0xf]
    %v204 = vld [vmem:[#allocation8 + $0x8] sm:$0xf]
    %v205 = vld [vmem:[#allocation8 + $0xc] sm:$0xf]
    %v206 = vld [vmem:[#allocation8 + $0x10] sm:$0xf]
    %v207 = vld [vmem:[#allocation8 + $0x14] sm:$0xf]
    %v208 = vld [vmem:[#allocation8 + $0x18] sm:$0xf]
    %v209 = vld [vmem:[#allocation8 + $0x1c] sm:$0xf]
    %v210 = vld [vmem:[%s2] sm:$0x1]
    %v212 = vlaneseq
    %v213 = vshrl.u32 %v212, 7
    %v214 = vsub.s32 0, %v213
    %v215 = vrot.slane %v210, %v214
    %v225 = vunpack.c.l.b16 %v202
    %v226 = vunpack.c.l.b16 %v203
    %v227 = vunpack.c.l.b16 %v204
    %v228 = vunpack.c.l.b16 %v205
    %v229 = vunpack.c.l.b16 %v206
    %v230 = vunpack.c.l.b16 %v207
    %v231 = vunpack.c.l.b16 %v208
    %v232 = vunpack.c.l.b16 %v209
    %v233 = vpack.c.b16 %v226, %v225
    %v234 = vpack.c.b16 %v228, %v227
    %v235 = vpack.c.b16 %v230, %v229
    %v236 = vpack.c.b16 %v232, %v231
    %vm241 = vcmask 523264
    %v243 = vsel %vm241, %v201, 0
    %245 = vmatprep.subr.bf16.mxu0 0
    %246 = vmatpush1.bf16.msra.mxu0 %v233
    %247 = vmatprep.subr.bf16.mxu0 0
    %248 = vmatpush1.bf16.msra.mxu0 %v234
    %249 = vmatprep.subr.bf16.mxu0 0
    %250 = vmatpush1.bf16.msra.mxu0 %v235
    %251 = vmatprep.subr.bf16.mxu0 0
    %252 = vmatpush1.bf16.msra.mxu0 %v236
    %253 = vmatprep.subr.bf16.mxu0 0
    %254 = vmatpush1.bf16.msra.mxu0 0
    %255 = vmatprep.subr.bf16.mxu0 0
    %256 = vmatpush1.bf16.msra.mxu0 0
    %257 = vmatprep.subr.bf16.mxu0 0
    %258 = vmatpush1.bf16.msra.mxu0 0
    %259 = vmatprep.subr.bf16.mxu0 0
    %260 = vmatpush1.bf16.msra.mxu0 0
    %261 = vmatprep.subr.bf16.mxu0 0
    %262 = vmatpush1.bf16.msra.mxu0 0
    %263 = vmatprep.subr.bf16.mxu0 0
    %264 = vmatpush1.bf16.msra.mxu0 0
    %265 = vmatprep.subr.bf16.mxu0 0
    %266 = vmatpush1.bf16.msra.mxu0 0
    %267 = vmatprep.subr.bf16.mxu0 0
    %268 = vmatpush1.bf16.msra.mxu0 0
    %269 = vmatprep.subr.bf16.mxu0 0
    %270 = vmatpush1.bf16.msra.mxu0 0
    %271 = vmatprep.subr.bf16.mxu0 0
    %272 = vmatpush1.bf16.msra.mxu0 0
    %273 = vmatprep.subr.bf16.mxu0 0
    %274 = vmatpush1.bf16.msra.mxu0 0
    %275 = vmatprep.subr.bf16.mxu0 0
    %276 = vmatpush1.bf16.msra.mxu0 0
    %277 = vmatprep.mubr.bf16.mxu0 0
    %278 = vmatmul.mubr.bf16.gmra.mrb[0].mxu0 %v243
    %v279 = vpop.f32.mrb[0].mxu0
    %v280 = vadd.f32 %v215, %v279
    %v281 = vpop.f32.mrb[0].mxu0
    %v282 = vpop.f32.mrb[0].mxu0
    %v283 = vadd.f32 %v215, %v282
    %v284 = vpop.f32.mrb[0].mxu0
    %285 = vdwg.mxu0
    %vm286 = vcmp.gt.f32.partialorder %v280, 0.0
    %vm287 = vcmp.gt.f32.partialorder %v283, 0.0
    %v288 = vmul.f32 %v280, 0.2
    %v289 = vmul.f32 %v283, 0.2
    %v290 = vsel %vm286, %v280, %v288
    %v291 = vsel %vm287, %v283, %v289
    %v292 = vpack.c.bf16 %v291, %v290
    %v293 = vld [vmem:[#allocation10] sm:$0xff]
    %v294 = vld [vmem:[#allocation10 + $0x8] sm:$0xff]
    %v295 = vld [vmem:[#allocation10 + $0x10] sm:$0xff]
    %v296 = vld [vmem:[#allocation10 + $0x18] sm:$0xff]
    %v297 = vld [vmem:[#allocation10 + $0x20] sm:$0xff]
    %v298 = vld [vmem:[#allocation10 + $0x28] sm:$0xff]
    %v299 = vld [vmem:[#allocation10 + $0x30] sm:$0xff]
    %v300 = vld [vmem:[#allocation10 + $0x38] sm:$0xff]
    %v301 = vld [vmem:[#allocation10 + $0x40] sm:$0xff]
    %v302 = vld [vmem:[#allocation10 + $0x48] sm:$0xff]
    %v303 = vld [vmem:[#allocation10 + $0x50] sm:$0xff]
    %v304 = vld [vmem:[#allocation10 + $0x58] sm:$0xff]
    %v305 = vld [vmem:[#allocation10 + $0x60] sm:$0xff]
    %v306 = vld [vmem:[#allocation10 + $0x68] sm:$0xff]
    %v307 = vld [vmem:[#allocation10 + $0x70] sm:$0xff]
    %v308 = vld [vmem:[#allocation10 + $0x78] sm:$0xff]
    %v309 = vld [vmem:[#allocation11] sm:$0x3]
    %v311 = vlaneseq
    %v312 = vshrl.u32 %v311, 7
    %v313 = vsub.s32 0, %v312
    %v314 = vrot.slane %v309, %v313
    %v315 = vlaneseq
    %v316 = vshrl.u32 %v315, 7
    %v317 = vsub.s32 1, %v316
    %v318 = vrot.slane %v309, %v317
    %v337 = vunpack.c.l.b16 %v293
    %v338 = vunpack.c.h.b16 %v293
    %v339 = vunpack.c.l.b16 %v294
    %v340 = vunpack.c.h.b16 %v294
    %v341 = vunpack.c.l.b16 %v295
    %v342 = vunpack.c.h.b16 %v295
    %v343 = vunpack.c.l.b16 %v296
    %v344 = vunpack.c.h.b16 %v296
    %v345 = vunpack.c.l.b16 %v297
    %v346 = vunpack.c.h.b16 %v297
    %v347 = vunpack.c.l.b16 %v298
    %v348 = vunpack.c.h.b16 %v298
    %v349 = vunpack.c.l.b16 %v299
    %v350 = vunpack.c.h.b16 %v299
    %v351 = vunpack.c.l.b16 %v300
    %v352 = vunpack.c.h.b16 %v300
    %v353 = vunpack.c.l.b16 %v301
    %v354 = vunpack.c.h.b16 %v301
    %v355 = vunpack.c.l.b16 %v302
    %v356 = vunpack.c.h.b16 %v302
    %v357 = vunpack.c.l.b16 %v303
    %v358 = vunpack.c.h.b16 %v303
    %v359 = vunpack.c.l.b16 %v304
    %v360 = vunpack.c.h.b16 %v304
    %v361 = vunpack.c.l.b16 %v305
    %v362 = vunpack.c.h.b16 %v305
    %v363 = vunpack.c.l.b16 %v306
    %v364 = vunpack.c.h.b16 %v306
    %v365 = vunpack.c.l.b16 %v307
    %v366 = vunpack.c.h.b16 %v307
    %v367 = vunpack.c.l.b16 %v308
    %v368 = vunpack.c.h.b16 %v308
    %v369 = vpack.c.b16 %v339, %v337
    %v370 = vpack.c.b16 %v340, %v338
    %v371 = vpack.c.b16 %v343, %v341
    %v372 = vpack.c.b16 %v344, %v342
    %v373 = vpack.c.b16 %v347, %v345
    %v374 = vpack.c.b16 %v348, %v346
    %v375 = vpack.c.b16 %v351, %v349
    %v376 = vpack.c.b16 %v352, %v350
    %v377 = vpack.c.b16 %v355, %v353
    %v378 = vpack.c.b16 %v356, %v354
    %v379 = vpack.c.b16 %v359, %v357
    %v380 = vpack.c.b16 %v360, %v358
    %v381 = vpack.c.b16 %v363, %v361
    %v382 = vpack.c.b16 %v364, %v362
    %v383 = vpack.c.b16 %v367, %v365
    %v384 = vpack.c.b16 %v368, %v366
    %401 = vmatprep.subr.bf16.mxu0 %v370
    %402 = vmatpush1.bf16.msra.mxu0 %v369
    %403 = vmatprep.subr.bf16.mxu0 %v372
    %404 = vmatpush1.bf16.msra.mxu0 %v371
    %405 = vmatprep.subr.bf16.mxu0 %v374
    %406 = vmatpush1.bf16.msra.mxu0 %v373
    %407 = vmatprep.subr.bf16.mxu0 %v376
    %408 = vmatpush1.bf16.msra.mxu0 %v375
    %409 = vmatprep.subr.bf16.mxu0 %v378
    %410 = vmatpush1.bf16.msra.mxu0 %v377
    %411 = vmatprep.subr.bf16.mxu0 %v380
    %412 = vmatpush1.bf16.msra.mxu0 %v379
    %413 = vmatprep.subr.bf16.mxu0 %v382
    %414 = vmatpush1.bf16.msra.mxu0 %v381
    %415 = vmatprep.subr.bf16.mxu0 %v384
    %416 = vmatpush1.bf16.msra.mxu0 %v383
    %417 = vmatprep.subr.bf16.mxu0 0
    %418 = vmatpush1.bf16.msra.mxu0 0
    %419 = vmatprep.subr.bf16.mxu0 0
    %420 = vmatpush1.bf16.msra.mxu0 0
    %421 = vmatprep.subr.bf16.mxu0 0
    %422 = vmatpush1.bf16.msra.mxu0 0
    %423 = vmatprep.subr.bf16.mxu0 0
    %424 = vmatpush1.bf16.msra.mxu0 0
    %425 = vmatprep.subr.bf16.mxu0 0
    %426 = vmatpush1.bf16.msra.mxu0 0
    %427 = vmatprep.subr.bf16.mxu0 0
    %428 = vmatpush1.bf16.msra.mxu0 0
    %429 = vmatprep.subr.bf16.mxu0 0
    %430 = vmatpush1.bf16.msra.mxu0 0
    %431 = vmatprep.subr.bf16.mxu0 0
    %432 = vmatpush1.bf16.msra.mxu0 0
    %433 = vmatprep.mubr.bf16.mxu0 0
    %434 = vmatmul.mubr.bf16.gmra.mrb[0].mxu0 %v292
    %v435 = vpop.f32.mrb[0].mxu0
    %v436 = vadd.f32 %v314, %v435
    %v437 = vpop.f32.mrb[0].mxu0
    %v438 = vadd.f32 %v318, %v437
    %v439 = vpop.f32.mrb[0].mxu0
    %v440 = vadd.f32 %v314, %v439
    %v441 = vpop.f32.mrb[0].mxu0
    %v442 = vadd.f32 %v318, %v441
    %443 = vdwg.mxu0
    %v444 = vmul.f32 %v436, %v197
    %v445 = vmul.f32 %v438, %v197
    %v446 = vmul.f32 %v440, %v198
    %v447 = vmul.f32 %v442, %v198
    %v448 = vadd.f32 %v444, %v446
    %v449 = vrot.slane %v448, 4
    %v450 = vadd.f32 %v448, %v449
    %v451 = vrot.slane %v450, 2
    %v452 = vadd.f32 %v450, %v451
    %v453 = vrot.slane %v452, 1
    %v454 = vadd.f32 %v452, %v453
    %v455 = vadd.f32 %v445, %v447
    %v456 = vrot.slane %v455, 4
    %v457 = vadd.f32 %v455, %v456
    %v458 = vrot.slane %v457, 2
    %v459 = vadd.f32 %v457, %v458
    %v460 = vrot.slane %v459, 1
    %v461 = vadd.f32 %v459, %v460
    %v462 = vmul.f32 %v454, 0.125
    %v463 = vmul.f32 %v461, 0.125
    %v464 = vmul.f32 %v444, %v444
    %v465 = vmul.f32 %v445, %v445
    %v466 = vmul.f32 %v446, %v446
    %v467 = vmul.f32 %v447, %v447
    %v468 = vadd.f32 %v464, %v466
    %v469 = vrot.slane %v468, 4
    %v470 = vadd.f32 %v468, %v469
    %v471 = vrot.slane %v470, 2
    %v472 = vadd.f32 %v470, %v471
    %v473 = vrot.slane %v472, 1
    %v474 = vadd.f32 %v472, %v473
    %v475 = vadd.f32 %v465, %v467
    %v476 = vrot.slane %v475, 4
    %v477 = vadd.f32 %v475, %v476
    %v478 = vrot.slane %v477, 2
    %v479 = vadd.f32 %v477, %v478
    %v480 = vrot.slane %v479, 1
    %v481 = vadd.f32 %v479, %v480
    %v482 = vmul.f32 %v474, 0.125
    %v483 = vmul.f32 %v481, 0.125
    %v484 = vmul.f32 %v462, %v462
    %v485 = vmul.f32 %v463, %v463
    %v486 = vsub.f32 %v482, %v484
    %v487 = vsub.f32 %v483, %v485
    %v488 = vmax.f32 %v486, 0.0
    %v489 = vmax.f32 %v487, 0.0
    %v490 = vld [vmem:[#allocation13] sm:$0x3]
    %v491 = vadd.f32 %v488, 0.8
    %v492 = vadd.f32 %v489, 0.8
    %v493 = vrsqrt.pop %v491
    %v494 = vrsqrt.pop %v492
    %v497 = vcombine.low %v493, %v494
    %v499 = vunpack.c.l.s4 1966171168
    %v500 = vunpack.c.0.s8 %v499
    %v501 = vlaneseq
    %v502 = vshrl.u32 %v501, 7
    %v503 = vsub.s32 %v500, %v502
    %v504 = vrot.slane %v497, %v503
    %v506 = vunpack.c.l.s4 1966171168
    %v507 = vunpack.c.0.s8 %v506
    %v508 = vlaneseq
    %v509 = vshrl.u32 %v508, 7
    %v510 = vsub.s32 %v507, %v509
    %v511 = vrot.slane %v504, %v510
    %v513 = vmul.f32 %v490, %v511
    %v514 = vld [vmem:[#allocation14] sm:$0x3]
    %v516 = vlaneseq
    %v517 = vshrl.u32 %v516, 7
    %v518 = vsub.s32 0, %v517
    %v519 = vrot.slane %v513, %v518
    %v520 = vlaneseq
    %v521 = vshrl.u32 %v520, 7
    %v522 = vsub.s32 1, %v521
    %v523 = vrot.slane %v513, %v522
    %v526 = vmul.f32 %v462, %v519
    %v527 = vmul.f32 %v463, %v523
    %v530 = vcombine.low %v526, %v527
    %v532 = vunpack.c.l.s4 1966171168
    %v533 = vunpack.c.0.s8 %v532
    %v534 = vlaneseq
    %v535 = vshrl.u32 %v534, 7
    %v536 = vsub.s32 %v533, %v535
    %v537 = vrot.slane %v530, %v536
    %v539 = vunpack.c.l.s4 1966171168
    %v540 = vunpack.c.0.s8 %v539
    %v541 = vlaneseq
    %v542 = vshrl.u32 %v541, 7
    %v543 = vsub.s32 %v540, %v542
    %v544 = vrot.slane %v537, %v543
    %v546 = vsub.f32 %v514, %v544
    %v547 = vmul.f32 %v436, %v519
    %v548 = vmul.f32 %v438, %v523
    %v549 = vmul.f32 %v440, %v519
    %v550 = vmul.f32 %v442, %v523
    %v552 = vlaneseq
    %v553 = vshrl.u32 %v552, 7
    %v554 = vsub.s32 0, %v553
    %v555 = vrot.slane %v546, %v554
    %v556 = vlaneseq
    %v557 = vshrl.u32 %v556, 7
    %v558 = vsub.s32 1, %v557
    %v559 = vrot.slane %v546, %v558
    %v562 = vadd.f32 %v547, %v555
    %v563 = vadd.f32 %v548, %v559
    %v564 = vadd.f32 %v549, %v555
    %v565 = vadd.f32 %v550, %v559
    %vm566 = vcmp.gt.f32.partialorder %v562, 0.0
    %vm567 = vcmp.gt.f32.partialorder %v563, 0.0
    %vm568 = vcmp.gt.f32.partialorder %v564, 0.0
    %vm569 = vcmp.gt.f32.partialorder %v565, 0.0
    %v570 = vmul.f32 %v562, 0.2
    %v571 = vmul.f32 %v563, 0.2
    %v572 = vmul.f32 %v564, 0.2
    %v573 = vmul.f32 %v565, 0.2
    %v574 = vsel %vm566, %v562, %v570
    %v575 = vsel %vm567, %v563, %v571
    %v576 = vsel %vm568, %v564, %v572
    %v577 = vsel %vm569, %v565, %v573
    %v578 = vpack.c.bf16 %v576, %v574
    %v579 = vpack.c.bf16 %v577, %v575
    %v580 = vld [vmem:[#allocation16] sm:$0xff]
    %v581 = vld [vmem:[#allocation16 + $0x8] sm:$0xff]
    %v582 = vld [vmem:[#allocation16 + $0x10] sm:$0xff]
    %v583 = vld [vmem:[#allocation16 + $0x18] sm:$0xff]
    %v584 = vld [vmem:[#allocation16 + $0x20] sm:$0xff]
    %v585 = vld [vmem:[#allocation16 + $0x28] sm:$0xff]
    %v586 = vld [vmem:[#allocation16 + $0x30] sm:$0xff]
    %v587 = vld [vmem:[#allocation16 + $0x38] sm:$0xff]
    %v588 = vld [vmem:[#allocation16 + $0x40] sm:$0xff]
    %v589 = vld [vmem:[#allocation16 + $0x48] sm:$0xff]
    %v590 = vld [vmem:[#allocation16 + $0x50] sm:$0xff]
    %v591 = vld [vmem:[#allocation16 + $0x58] sm:$0xff]
    %v592 = vld [vmem:[#allocation16 + $0x60] sm:$0xff]
    %v593 = vld [vmem:[#allocation16 + $0x68] sm:$0xff]
    %v594 = vld [vmem:[#allocation16 + $0x70] sm:$0xff]
    %v595 = vld [vmem:[#allocation16 + $0x78] sm:$0xff]
    %v596 = vld [vmem:[#allocation16 + $0x80] sm:$0xff]
    %v597 = vld [vmem:[#allocation16 + $0x88] sm:$0xff]
    %v598 = vld [vmem:[#allocation16 + $0x90] sm:$0xff]
    %v599 = vld [vmem:[#allocation16 + $0x98] sm:$0xff]
    %v600 = vld [vmem:[#allocation16 + $0xa0] sm:$0xff]
    %v601 = vld [vmem:[#allocation16 + $0xa8] sm:$0xff]
    %v602 = vld [vmem:[#allocation16 + $0xb0] sm:$0xff]
    %v603 = vld [vmem:[#allocation16 + $0xb8] sm:$0xff]
    %v604 = vld [vmem:[#allocation16 + $0xc0] sm:$0xff]
    %v605 = vld [vmem:[#allocation16 + $0xc8] sm:$0xff]
    %v606 = vld [vmem:[#allocation16 + $0xd0] sm:$0xff]
    %v607 = vld [vmem:[#allocation16 + $0xd8] sm:$0xff]
    %v608 = vld [vmem:[#allocation16 + $0xe0] sm:$0xff]
    %v609 = vld [vmem:[#allocation16 + $0xe8] sm:$0xff]
    %v610 = vld [vmem:[#allocation16 + $0xf0] sm:$0xff]
    %v611 = vld [vmem:[#allocation16 + $0xf8] sm:$0xff]
    %v612 = vld [vmem:[#allocation16 + $0x100] sm:$0xff]
    %v613 = vld [vmem:[#allocation16 + $0x108] sm:$0xff]
    %v614 = vld [vmem:[#allocation16 + $0x110] sm:$0xff]
    %v615 = vld [vmem:[#allocation16 + $0x118] sm:$0xff]
    %v616 = vld [vmem:[#allocation16 + $0x120] sm:$0xff]
    %v617 = vld [vmem:[#allocation16 + $0x128] sm:$0xff]
    %v618 = vld [vmem:[#allocation16 + $0x130] sm:$0xff]
    %v619 = vld [vmem:[#allocation16 + $0x138] sm:$0xff]
    %v620 = vld [vmem:[#allocation16 + $0x140] sm:$0xff]
    %v621 = vld [vmem:[#allocation16 + $0x148] sm:$0xff]
    %v622 = vld [vmem:[#allocation16 + $0x150] sm:$0xff]
    %v623 = vld [vmem:[#allocation16 + $0x158] sm:$0xff]
    %v624 = vld [vmem:[#allocation16 + $0x160] sm:$0xff]
    %v625 = vld [vmem:[#allocation16 + $0x168] sm:$0xff]
    %v626 = vld [vmem:[#allocation16 + $0x170] sm:$0xff]
    %v627 = vld [vmem:[#allocation16 + $0x178] sm:$0xff]
    %v628 = vld [vmem:[#allocation16 + $0x180] sm:$0xff]
    %v629 = vld [vmem:[#allocation16 + $0x188] sm:$0xff]
    %v630 = vld [vmem:[#allocation16 + $0x190] sm:$0xff]
    %v631 = vld [vmem:[#allocation16 + $0x198] sm:$0xff]
    %v632 = vld [vmem:[#allocation16 + $0x1a0] sm:$0xff]
    %v633 = vld [vmem:[#allocation16 + $0x1a8] sm:$0xff]
    %v634 = vld [vmem:[#allocation16 + $0x1b0] sm:$0xff]
    %v635 = vld [vmem:[#allocation16 + $0x1b8] sm:$0xff]
    %v636 = vld [vmem:[#allocation16 + $0x1c0] sm:$0xff]
    %v637 = vld [vmem:[#allocation16 + $0x1c8] sm:$0xff]
    %v638 = vld [vmem:[#allocation16 + $0x1d0] sm:$0xff]
    %v639 = vld [vmem:[#allocation16 + $0x1d8] sm:$0xff]
    %v640 = vld [vmem:[#allocation16 + $0x1e0] sm:$0xff]
    %v641 = vld [vmem:[#allocation16 + $0x1e8] sm:$0xff]
    %v642 = vld [vmem:[#allocation16 + $0x1f0] sm:$0xff]
    %v643 = vld [vmem:[#allocation16 + $0x1f8] sm:$0xff]
    %v644 = vld [vmem:[%s8] sm:$0xf]
    %v646 = vlaneseq
    %v647 = vshrl.u32 %v646, 7
    %v648 = vsub.s32 0, %v647
    %v649 = vrot.slane %v644, %v648
    %v650 = vlaneseq
    %v651 = vshrl.u32 %v650, 7
    %v652 = vsub.s32 1, %v651
    %v653 = vrot.slane %v644, %v652
    %v654 = vlaneseq
    %v655 = vshrl.u32 %v654, 7
    %v656 = vsub.s32 2, %v655
    %v657 = vrot.slane %v644, %v656
    %v658 = vlaneseq
    %v659 = vshrl.u32 %v658, 7
    %v660 = vsub.s32 3, %v659
    %v661 = vrot.slane %v644, %v660
    %v730 = vunpack.c.l.b16 %v580
    %v731 = vunpack.c.h.b16 %v580
    %v732 = vunpack.c.l.b16 %v581
    %v733 = vunpack.c.h.b16 %v581
    %v734 = vunpack.c.l.b16 %v582
    %v735 = vunpack.c.h.b16 %v582
    %v736 = vunpack.c.l.b16 %v583
    %v737 = vunpack.c.h.b16 %v583
    %v738 = vunpack.c.l.b16 %v584
    %v739 = vunpack.c.h.b16 %v584
    %v740 = vunpack.c.l.b16 %v585
    %v741 = vunpack.c.h.b16 %v585
    %v742 = vunpack.c.l.b16 %v586
    %v743 = vunpack.c.h.b16 %v586
    %v744 = vunpack.c.l.b16 %v587
    %v745 = vunpack.c.h.b16 %v587
    %v746 = vunpack.c.l.b16 %v588
    %v747 = vunpack.c.h.b16 %v588
    %v748 = vunpack.c.l.b16 %v589
    %v749 = vunpack.c.h.b16 %v589
    %v750 = vunpack.c.l.b16 %v590
    %v751 = vunpack.c.h.b16 %v590
    %v752 = vunpack.c.l.b16 %v591
    %v753 = vunpack.c.h.b16 %v591
    %v754 = vunpack.c.l.b16 %v592
    %v755 = vunpack.c.h.b16 %v592
    %v756 = vunpack.c.l.b16 %v593
    %v757 = vunpack.c.h.b16 %v593
    %v758 = vunpack.c.l.b16 %v594
    %v759 = vunpack.c.h.b16 %v594
    %v760 = vunpack.c.l.b16 %v595
    %v761 = vunpack.c.h.b16 %v595
    %v762 = vunpack.c.l.b16 %v596
    %v763 = vunpack.c.h.b16 %v596
    %v764 = vunpack.c.l.b16 %v597
    %v765 = vunpack.c.h.b16 %v597
    %v766 = vunpack.c.l.b16 %v598
    %v767 = vunpack.c.h.b16 %v598
    %v768 = vunpack.c.l.b16 %v599
    %v769 = vunpack.c.h.b16 %v599
    %v770 = vunpack.c.l.b16 %v600
    %v771 = vunpack.c.h.b16 %v600
    %v772 = vunpack.c.l.b16 %v601
    %v773 = vunpack.c.h.b16 %v601
    %v774 = vunpack.c.l.b16 %v602
    %v775 = vunpack.c.h.b16 %v602
    %v776 = vunpack.c.l.b16 %v603
    %v777 = vunpack.c.h.b16 %v603
    %v778 = vunpack.c.l.b16 %v604
    %v779 = vunpack.c.h.b16 %v604
    %v780 = vunpack.c.l.b16 %v605
    %v781 = vunpack.c.h.b16 %v605
    %v782 = vunpack.c.l.b16 %v606
    %v783 = vunpack.c.h.b16 %v606
    %v784 = vunpack.c.l.b16 %v607
    %v785 = vunpack.c.h.b16 %v607
    %v786 = vunpack.c.l.b16 %v608
    %v787 = vunpack.c.h.b16 %v608
    %v788 = vunpack.c.l.b16 %v609
    %v789 = vunpack.c.h.b16 %v609
    %v790 = vunpack.c.l.b16 %v610
    %v791 = vunpack.c.h.b16 %v610
    %v792 = vunpack.c.l.b16 %v611
    %v793 = vunpack.c.h.b16 %v611
    %v794 = vunpack.c.l.b16 %v612
    %v795 = vunpack.c.h.b16 %v612
    %v796 = vunpack.c.l.b16 %v613
    %v797 = vunpack.c.h.b16 %v613
    %v798 = vunpack.c.l.b16 %v614
    %v799 = vunpack.c.h.b16 %v614
    %v800 = vunpack.c.l.b16 %v615
    %v801 = vunpack.c.h.b16 %v615
    %v802 = vunpack.c.l.b16 %v616
    %v803 = vunpack.c.h.b16 %v616
    %v804 = vunpack.c.l.b16 %v617
    %v805 = vunpack.c.h.b16 %v617
    %v806 = vunpack.c.l.b16 %v618
    %v807 = vunpack.c.h.b16 %v618
    %v808 = vunpack.c.l.b16 %v619
    %v809 = vunpack.c.h.b16 %v619
    %v810 = vunpack.c.l.b16 %v620
    %v811 = vunpack.c.h.b16 %v620
    %v812 = vunpack.c.l.b16 %v621
    %v813 = vunpack.c.h.b16 %v621
    %v814 = vunpack.c.l.b16 %v622
    %v815 = vunpack.c.h.b16 %v622
    %v816 = vunpack.c.l.b16 %v623
    %v817 = vunpack.c.h.b16 %v623
    %v818 = vunpack.c.l.b16 %v624
    %v819 = vunpack.c.h.b16 %v624
    %v820 = vunpack.c.l.b16 %v625
    %v821 = vunpack.c.h.b16 %v625
    %v822 = vunpack.c.l.b16 %v626
    %v823 = vunpack.c.h.b16 %v626
    %v824 = vunpack.c.l.b16 %v627
    %v825 = vunpack.c.h.b16 %v627
    %v826 = vunpack.c.l.b16 %v628
    %v827 = vunpack.c.h.b16 %v628
    %v828 = vunpack.c.l.b16 %v629
    %v829 = vunpack.c.h.b16 %v629
    %v830 = vunpack.c.l.b16 %v630
    %v831 = vunpack.c.h.b16 %v630
    %v832 = vunpack.c.l.b16 %v631
    %v833 = vunpack.c.h.b16 %v631
    %v834 = vunpack.c.l.b16 %v632
    %v835 = vunpack.c.h.b16 %v632
    %v836 = vunpack.c.l.b16 %v633
    %v837 = vunpack.c.h.b16 %v633
    %v838 = vunpack.c.l.b16 %v634
    %v839 = vunpack.c.h.b16 %v634
    %v840 = vunpack.c.l.b16 %v635
    %v841 = vunpack.c.h.b16 %v635
    %v842 = vunpack.c.l.b16 %v636
    %v843 = vunpack.c.h.b16 %v636
    %v844 = vunpack.c.l.b16 %v637
    %v845 = vunpack.c.h.b16 %v637
    %v846 = vunpack.c.l.b16 %v638
    %v847 = vunpack.c.h.b16 %v638
    %v848 = vunpack.c.l.b16 %v639
    %v849 = vunpack.c.h.b16 %v639
    %v850 = vunpack.c.l.b16 %v640
    %v851 = vunpack.c.h.b16 %v640
    %v852 = vunpack.c.l.b16 %v641
    %v853 = vunpack.c.h.b16 %v641
    %v854 = vunpack.c.l.b16 %v642
    %v855 = vunpack.c.h.b16 %v642
    %v856 = vunpack.c.l.b16 %v643
    %v857 = vunpack.c.h.b16 %v643
    %v858 = vpack.c.b16 %v734, %v730
    %v859 = vpack.c.b16 %v735, %v731
    %v860 = vpack.c.b16 %v736, %v732
    %v861 = vpack.c.b16 %v737, %v733
    %v862 = vpack.c.b16 %v742, %v738
    %v863 = vpack.c.b16 %v743, %v739
    %v864 = vpack.c.b16 %v744, %v740
    %v865 = vpack.c.b16 %v745, %v741
    %v866 = vpack.c.b16 %v750, %v746
    %v867 = vpack.c.b16 %v751, %v747
    %v868 = vpack.c.b16 %v752, %v748
    %v869 = vpack.c.b16 %v753, %v749
    %v870 = vpack.c.b16 %v758, %v754
    %v871 = vpack.c.b16 %v759, %v755
    %v872 = vpack.c.b16 %v760, %v756
    %v873 = vpack.c.b16 %v761, %v757
    %v874 = vpack.c.b16 %v766, %v762
    %v875 = vpack.c.b16 %v767, %v763
    %v876 = vpack.c.b16 %v768, %v764
    %v877 = vpack.c.b16 %v769, %v765
    %v878 = vpack.c.b16 %v774, %v770
    %v879 = vpack.c.b16 %v775, %v771
    %v880 = vpack.c.b16 %v776, %v772
    %v881 = vpack.c.b16 %v777, %v773
    %v882 = vpack.c.b16 %v782, %v778
    %v883 = vpack.c.b16 %v783, %v779
    %v884 = vpack.c.b16 %v784, %v780
    %v885 = vpack.c.b16 %v785, %v781
    %v886 = vpack.c.b16 %v790, %v786
    %v887 = vpack.c.b16 %v791, %v787
    %v888 = vpack.c.b16 %v792, %v788
    %v889 = vpack.c.b16 %v793, %v789
    %v890 = vpack.c.b16 %v798, %v794
    %v891 = vpack.c.b16 %v799, %v795
    %v892 = vpack.c.b16 %v800, %v796
    %v893 = vpack.c.b16 %v801, %v797
    %v894 = vpack.c.b16 %v806, %v802
    %v895 = vpack.c.b16 %v807, %v803
    %v896 = vpack.c.b16 %v808, %v804
    %v897 = vpack.c.b16 %v809, %v805
    %v898 = vpack.c.b16 %v814, %v810
    %v899 = vpack.c.b16 %v815, %v811
    %v900 = vpack.c.b16 %v816, %v812
    %v901 = vpack.c.b16 %v817, %v813
    %v902 = vpack.c.b16 %v822, %v818
    %v903 = vpack.c.b16 %v823, %v819
    %v904 = vpack.c.b16 %v824, %v820
    %v905 = vpack.c.b16 %v825, %v821
    %v906 = vpack.c.b16 %v830, %v826
    %v907 = vpack.c.b16 %v831, %v827
    %v908 = vpack.c.b16 %v832, %v828
    %v909 = vpack.c.b16 %v833, %v829
    %v910 = vpack.c.b16 %v838, %v834
    %v911 = vpack.c.b16 %v839, %v835
    %v912 = vpack.c.b16 %v840, %v836
    %v913 = vpack.c.b16 %v841, %v837
    %v914 = vpack.c.b16 %v846, %v842
    %v915 = vpack.c.b16 %v847, %v843
    %v916 = vpack.c.b16 %v848, %v844
    %v917 = vpack.c.b16 %v849, %v845
    %v918 = vpack.c.b16 %v854, %v850
    %v919 = vpack.c.b16 %v855, %v851
    %v920 = vpack.c.b16 %v856, %v852
    %v921 = vpack.c.b16 %v857, %v853
    %986 = vmatprep.subr.bf16.mxu0 %v859
    %987 = vmatpush1.bf16.msra.mxu0 %v858
    %988 = vmatprep.subr.bf16.mxu0 %v863
    %989 = vmatpush1.bf16.msra.mxu0 %v862
    %990 = vmatprep.subr.bf16.mxu0 %v867
    %991 = vmatpush1.bf16.msra.mxu0 %v866
    %992 = vmatprep.subr.bf16.mxu0 %v871
    %993 = vmatpush1.bf16.msra.mxu0 %v870
    %994 = vmatprep.subr.bf16.mxu0 %v875
    %995 = vmatpush1.bf16.msra.mxu0 %v874
    %996 = vmatprep.subr.bf16.mxu0 %v879
    %997 = vmatpush1.bf16.msra.mxu0 %v878
    %998 = vmatprep.subr.bf16.mxu0 %v883
    %999 = vmatpush1.bf16.msra.mxu0 %v882
    %1000 = vmatprep.subr.bf16.mxu0 %v887
    %1001 = vmatpush1.bf16.msra.mxu0 %v886
    %1002 = vmatprep.subr.bf16.mxu0 %v891
    %1003 = vmatpush1.bf16.msra.mxu0 %v890
    %1004 = vmatprep.subr.bf16.mxu0 %v895
    %1005 = vmatpush1.bf16.msra.mxu0 %v894
    %1006 = vmatprep.subr.bf16.mxu0 %v899
    %1007 = vmatpush1.bf16.msra.mxu0 %v898
    %1008 = vmatprep.subr.bf16.mxu0 %v903
    %1009 = vmatpush1.bf16.msra.mxu0 %v902
    %1010 = vmatprep.subr.bf16.mxu0 %v907
    %1011 = vmatpush1.bf16.msra.mxu0 %v906
    %1012 = vmatprep.subr.bf16.mxu0 %v911
    %1013 = vmatpush1.bf16.msra.mxu0 %v910
    %1014 = vmatprep.subr.bf16.mxu0 %v915
    %1015 = vmatpush1.bf16.msra.mxu0 %v914
    %1016 = vmatprep.subr.bf16.mxu0 %v919
    %1017 = vmatpush1.bf16.msra.mxu0 %v918
    %1018 = vmatprep.mubr.bf16.mxu0 %v579
    %1019 = vmatmul.mubr.bf16.gmra.mrb[0].mxu0 %v578
    %v1020 = vpop.f32.mrb[0].mxu0
    %v1021 = vadd.f32 %v649, %v1020
    %v1022 = vpop.f32.mrb[0].mxu0
    %v1023 = vadd.f32 %v653, %v1022
    %v1024 = vpop.f32.mrb[0].mxu0
    %v1025 = vadd.f32 %v649, %v1024
    %v1026 = vpop.f32.mrb[0].mxu0
    %v1027 = vadd.f32 %v653, %v1026
    %1028 = vdwg.mxu0
    %1029 = vmatprep.subr.bf16.mxu0 %v861
    %1030 = vmatpush1.bf16.msra.mxu0 %v860
    %1031 = vmatprep.subr.bf16.mxu0 %v865
    %1032 = vmatpush1.bf16.msra.mxu0 %v864
    %1033 = vmatprep.subr.bf16.mxu0 %v869
    %1034 = vmatpush1.bf16.msra.mxu0 %v868
    %1035 = vmatprep.subr.bf16.mxu0 %v873
    %1036 = vmatpush1.bf16.msra.mxu0 %v872
    %1037 = vmatprep.subr.bf16.mxu0 %v877
    %1038 = vmatpush1.bf16.msra.mxu0 %v876
    %1039 = vmatprep.subr.bf16.mxu0 %v881
    %1040 = vmatpush1.bf16.msra.mxu0 %v880
    %1041 = vmatprep.subr.bf16.mxu0 %v885
    %1042 = vmatpush1.bf16.msra.mxu0 %v884
    %1043 = vmatprep.subr.bf16.mxu0 %v889
    %1044 = vmatpush1.bf16.msra.mxu0 %v888
    %1045 = vmatprep.subr.bf16.mxu0 %v893
    %1046 = vmatpush1.bf16.msra.mxu0 %v892
    %1047 = vmatprep.subr.bf16.mxu0 %v897
    %1048 = vmatpush1.bf16.msra.mxu0 %v896
    %1049 = vmatprep.subr.bf16.mxu0 %v901
    %1050 = vmatpush1.bf16.msra.mxu0 %v900
    %1051 = vmatprep.subr.bf16.mxu0 %v905
    %1052 = vmatpush1.bf16.msra.mxu0 %v904
    %1053 = vmatprep.subr.bf16.mxu0 %v909
    %1054 = vmatpush1.bf16.msra.mxu0 %v908
    %1055 = vmatprep.subr.bf16.mxu0 %v913
    %1056 = vmatpush1.bf16.msra.mxu0 %v912
    %1057 = vmatprep.subr.bf16.mxu0 %v917
    %1058 = vmatpush1.bf16.msra.mxu0 %v916
    %1059 = vmatprep.subr.bf16.mxu0 %v921
    %1060 = vmatpush1.bf16.msra.mxu0 %v920
    %1061 = vmatprep.mubr.bf16.mxu0 %v579
    %1062 = vmatmul.mubr.bf16.gmra.mrb[0].mxu0 %v578
    %v1063 = vpop.f32.mrb[0].mxu0
    %v1064 = vadd.f32 %v657, %v1063
    %v1065 = vpop.f32.mrb[0].mxu0
    %v1066 = vadd.f32 %v661, %v1065
    %v1067 = vpop.f32.mrb[0].mxu0
    %v1068 = vadd.f32 %v657, %v1067
    %v1069 = vpop.f32.mrb[0].mxu0
    %v1070 = vadd.f32 %v661, %v1069
    %1071 = vdwg.mxu0
    %v1072 = vmul.f32 %v1021, %v197
    %v1073 = vmul.f32 %v1023, %v197
    %v1074 = vmul.f32 %v1064, %v197
    %v1075 = vmul.f32 %v1066, %v197
    %v1076 = vmul.f32 %v1025, %v198
    %v1077 = vmul.f32 %v1027, %v198
    %v1078 = vmul.f32 %v1068, %v198
    %v1079 = vmul.f32 %v1070, %v198
    %v1080 = vadd.f32 %v1072, %v1076
    %v1081 = vrot.slane %v1080, 4
    %v1082 = vadd.f32 %v1080, %v1081
    %v1083 = vrot.slane %v1082, 2
    %v1084 = vadd.f32 %v1082, %v1083
    %v1085 = vrot.slane %v1084, 1
    %v1086 = vadd.f32 %v1084, %v1085
    %v1087 = vadd.f32 %v1073, %v1077
    %v1088 = vrot.slane %v1087, 4
    %v1089 = vadd.f32 %v1087, %v1088
    %v1090 = vrot.slane %v1089, 2
    %v1091 = vadd.f32 %v1089, %v1090
    %v1092 = vrot.slane %v1091, 1
    %v1093 = vadd.f32 %v1091, %v1092
    %v1094 = vadd.f32 %v1074, %v1078
    %v1095 = vrot.slane %v1094, 4
    %v1096 = vadd.f32 %v1094, %v1095
    %v1097 = vrot.slane %v1096, 2
    %v1098 = vadd.f32 %v1096, %v1097
    %v1099 = vrot.slane %v1098, 1
    %v1100 = vadd.f32 %v1098, %v1099
    %v1101 = vadd.f32 %v1075, %v1079
    %v1102 = vrot.slane %v1101, 4
    %v1103 = vadd.f32 %v1101, %v1102
    %v1104 = vrot.slane %v1103, 2
    %v1105 = vadd.f32 %v1103, %v1104
    %v1106 = vrot.slane %v1105, 1
    %v1107 = vadd.f32 %v1105, %v1106
    %v1108 = vmul.f32 %v1086, 0.125
    %v1109 = vmul.f32 %v1093, 0.125
    %v1110 = vmul.f32 %v1100, 0.125
    %v1111 = vmul.f32 %v1107, 0.125
    %v1112 = vmul.f32 %v1072, %v1072
    %v1113 = vmul.f32 %v1073, %v1073
    %v1114 = vmul.f32 %v1074, %v1074
    %v1115 = vmul.f32 %v1075, %v1075
    %v1116 = vmul.f32 %v1076, %v1076
    %v1117 = vmul.f32 %v1077, %v1077
    %v1118 = vmul.f32 %v1078, %v1078
    %v1119 = vmul.f32 %v1079, %v1079
    %v1120 = vadd.f32 %v1112, %v1116
    %v1121 = vrot.slane %v1120, 4
    %v1122 = vadd.f32 %v1120, %v1121
    %v1123 = vrot.slane %v1122, 2
    %v1124 = vadd.f32 %v1122, %v1123
    %v1125 = vrot.slane %v1124, 1
    %v1126 = vadd.f32 %v1124, %v1125
    %v1127 = vadd.f32 %v1113, %v1117
    %v1128 = vrot.slane %v1127, 4
    %v1129 = vadd.f32 %v1127, %v1128
    %v1130 = vrot.slane %v1129, 2
    %v1131 = vadd.f32 %v1129, %v1130
    %v1132 = vrot.slane %v1131, 1
    %v1133 = vadd.f32 %v1131, %v1132
    %v1134 = vadd.f32 %v1114, %v1118
    %v1135 = vrot.slane %v1134, 4
    %v1136 = vadd.f32 %v1134, %v1135
    %v1137 = vrot.slane %v1136, 2
    %v1138 = vadd.f32 %v1136, %v1137
    %v1139 = vrot.slane %v1138, 1
    %v1140 = vadd.f32 %v1138, %v1139
    %v1141 = vadd.f32 %v1115, %v1119
    %v1142 = vrot.slane %v1141, 4
    %v1143 = vadd.f32 %v1141, %v1142
    %v1144 = vrot.slane %v1143, 2
    %v1145 = vadd.f32 %v1143, %v1144
    %v1146 = vrot.slane %v1145, 1
    %v1147 = vadd.f32 %v1145, %v1146
    %v1148 = vmul.f32 %v1126, 0.125
    %v1149 = vmul.f32 %v1133, 0.125
    %v1150 = vmul.f32 %v1140, 0.125
    %v1151 = vmul.f32 %v1147, 0.125
    %v1152 = vmul.f32 %v1108, %v1108
    %v1153 = vmul.f32 %v1109, %v1109
    %v1154 = vmul.f32 %v1110, %v1110
    %v1155 = vmul.f32 %v1111, %v1111
    %v1156 = vsub.f32 %v1148, %v1152
    %v1157 = vsub.f32 %v1149, %v1153
    %v1158 = vsub.f32 %v1150, %v1154
    %v1159 = vsub.f32 %v1151, %v1155
    %v1160 = vmax.f32 %v1156, 0.0
    %v1161 = vmax.f32 %v1157, 0.0
    %v1162 = vmax.f32 %v1158, 0.0
    %v1163 = vmax.f32 %v1159, 0.0
    %v1164 = vld [vmem:[%s9] sm:$0xf]
    %v1165 = vadd.f32 %v1160, 0.8
    %v1166 = vadd.f32 %v1161, 0.8
    %v1167 = vadd.f32 %v1162, 0.8
    %v1168 = vadd.f32 %v1163, 0.8
    %v1169 = vrsqrt.pop %v1165
    %v1170 = vrsqrt.pop %v1166
    %v1171 = vrsqrt.pop %v1167
    %v1172 = vrsqrt.pop %v1168
    %v1177 = vcombine.low %v1169, %v1170
    %v1178 = vcombine.low %v1171, %v1172
    %v1180 = vunpack.c.l.s4 1966171168
    %v1181 = vunpack.c.0.s8 %v1180
    %v1182 = vlaneseq
    %v1183 = vshrl.u32 %v1182, 7
    %v1184 = vsub.s32 %v1181, %v1183
    %v1185 = vrot.slane %v1177, %v1184
    %v1187 = vunpack.c.l.s4 1966171168
    %v1188 = vunpack.c.0.s8 %v1187
    %v1189 = vlaneseq
    %v1190 = vshrl.u32 %v1189, 7
    %v1191 = vsub.s32 %v1188, %v1190
    %v1192 = vrot.slane %v1178, %v1191
    %v1193 = vcombine.low %v1185, %v1192
    %v1195 = vunpack.c.l.s4 1966171168
    %v1196 = vunpack.c.0.s8 %v1195
    %v1197 = vlaneseq
    %v1198 = vshrl.u32 %v1197, 7
    %v1199 = vsub.s32 %v1196, %v1198
    %v1200 = vrot.slane %v1193, %v1199
    %v1202 = vmul.f32 %v1164, %v1200
    %v1203 = vld [vmem:[%s10] sm:$0xf]
    %v1205 = vlaneseq
    %v1206 = vshrl.u32 %v1205, 7
    %v1207 = vsub.s32 0, %v1206
    %v1208 = vrot.slane %v1202, %v1207
    %v1209 = vlaneseq
    %v1210 = vshrl.u32 %v1209, 7
    %v1211 = vsub.s32 1, %v1210
    %v1212 = vrot.slane %v1202, %v1211
    %v1213 = vlaneseq
    %v1214 = vshrl.u32 %v1213, 7
    %v1215 = vsub.s32 2, %v1214
    %v1216 = vrot.slane %v1202, %v1215
    %v1217 = vlaneseq
    %v1218 = vshrl.u32 %v1217, 7
    %v1219 = vsub.s32 3, %v1218
    %v1220 = vrot.slane %v1202, %v1219
    %v1225 = vmul.f32 %v1108, %v1208
    %v1226 = vmul.f32 %v1109, %v1212
    %v1227 = vmul.f32 %v1110, %v1216
    %v1228 = vmul.f32 %v1111, %v1220
    %v1233 = vcombine.low %v1225, %v1226
    %v1234 = vcombine.low %v1227, %v1228
    %v1236 = vunpack.c.l.s4 1966171168
    %v1237 = vunpack.c.0.s8 %v1236
    %v1238 = vlaneseq
    %v1239 = vshrl.u32 %v1238, 7
    %v1240 = vsub.s32 %v1237, %v1239
    %v1241 = vrot.slane %v1233, %v1240
    %v1243 = vunpack.c.l.s4 1966171168
    %v1244 = vunpack.c.0.s8 %v1243
    %v1245 = vlaneseq
    %v1246 = vshrl.u32 %v1245, 7
    %v1247 = vsub.s32 %v1244, %v1246
    %v1248 = vrot.slane %v1234, %v1247
    %v1249 = vcombine.low %v1241, %v1248
    %v1251 = vunpack.c.l.s4 1966171168
    %v1252 = vunpack.c.0.s8 %v1251
    %v1253 = vlaneseq
    %v1254 = vshrl.u32 %v1253, 7
    %v1255 = vsub.s32 %v1252, %v1254
    %v1256 = vrot.slane %v1249, %v1255
    %v1258 = vsub.f32 %v1203, %v1256
    %v1259 = vmul.f32 %v1021, %v1208
    %v1260 = vmul.f32 %v1023, %v1212
    %v1261 = vmul.f32 %v1064, %v1216
    %v1262 = vmul.f32 %v1066, %v1220
    %v1263 = vmul.f32 %v1025, %v1208
    %v1264 = vmul.f32 %v1027, %v1212
    %v1265 = vmul.f32 %v1068, %v1216
    %v1266 = vmul.f32 %v1070, %v1220
    %v1268 = vlaneseq
    %v1269 = vshrl.u32 %v1268, 7
    %v1270 = vsub.s32 0, %v1269
    %v1271 = vrot.slane %v1258, %v1270
    %v1272 = vlaneseq
    %v1273 = vshrl.u32 %v1272, 7
    %v1274 = vsub.s32 1, %v1273
    %v1275 = vrot.slane %v1258, %v1274
    %v1276 = vlaneseq
    %v1277 = vshrl.u32 %v1276, 7
    %v1278 = vsub.s32 2, %v1277
    %v1279 = vrot.slane %v1258, %v1278
    %v1280 = vlaneseq
    %v1281 = vshrl.u32 %v1280, 7
    %v1282 = vsub.s32 3, %v1281
    %v1283 = vrot.slane %v1258, %v1282
    %v1288 = vadd.f32 %v1259, %v1271
    %v1289 = vadd.f32 %v1260, %v1275
    %v1290 = vadd.f32 %v1261, %v1279
    %v1291 = vadd.f32 %v1262, %v1283
    %v1292 = vadd.f32 %v1263, %v1271
    %v1293 = vadd.f32 %v1264, %v1275
    %v1294 = vadd.f32 %v1265, %v1279
    %v1295 = vadd.f32 %v1266, %v1283
    %vm1296 = vcmp.gt.f32.partialorder %v1288, 0.0
    %vm1297 = vcmp.gt.f32.partialorder %v1289, 0.0
    %vm1298 = vcmp.gt.f32.partialorder %v1290, 0.0
    %vm1299 = vcmp.gt.f32.partialorder %v1291, 0.0
    %vm1300 = vcmp.gt.f32.partialorder %v1292, 0.0
    %vm1301 = vcmp.gt.f32.partialorder %v1293, 0.0
    %vm1302 = vcmp.gt.f32.partialorder %v1294, 0.0
    %vm1303 = vcmp.gt.f32.partialorder %v1295, 0.0
    %v1304 = vmul.f32 %v1288, 0.2
    %v1305 = vmul.f32 %v1289, 0.2
    %v1306 = vmul.f32 %v1290, 0.2
    %v1307 = vmul.f32 %v1291, 0.2
    %v1308 = vmul.f32 %v1292, 0.2
    %v1309 = vmul.f32 %v1293, 0.2
    %v1310 = vmul.f32 %v1294, 0.2
    %v1311 = vmul.f32 %v1295, 0.2
    %v1312 = vsel %vm1296, %v1288, %v1304
    %v1313 = vsel %vm1297, %v1289, %v1305
    %v1314 = vsel %vm1298, %v1290, %v1306
    %v1315 = vsel %vm1299, %v1291, %v1307
    %v1316 = vsel %vm1300, %v1292, %v1308
    %v1317 = vsel %vm1301, %v1293, %v1309
    %v1318 = vsel %vm1302, %v1294, %v1310
    %v1319 = vsel %vm1303, %v1295, %v1311
    %s1320 = smul.u32 4, 64
    %s1321 = smul.u32 %s1320, 8
    %s1322 = sshll.u32 %s1321, 4
    %1323 = dma.done [#allocation4], %s1322
    %v1324 = vpack.c.bf16 %v1316, %v1312
    %v1325 = vpack.c.bf16 %v1317, %v1313
    %v1326 = vpack.c.bf16 %v1318, %v1314
    %v1327 = vpack.c.bf16 %v1319, %v1315
    %v1328 = vld [vmem:[#allocation2] sm:$0xff]
    %v1329 = vld [vmem:[#allocation2 + $0x8] sm:$0xff]
    %v1330 = vld [vmem:[#allocation2 + $0x10] sm:$0xff]
    %v1331 = vld [vmem:[#allocation2 + $0x18] sm:$0xff]
    %v1332 = vld [vmem:[#allocation2 + $0x20] sm:$0xff]
    %v1333 = vld [vmem:[#allocation2 + $0x28] sm:$0xff]
    %v1334 = vld [vmem:[#allocation2 + $0x30] sm:$0xff]
    %v1335 = vld [vmem:[#allocation2 + $0x38] sm:$0xff]
    %v1336 = vld [vmem:[#allocation2 + $0x40] sm:$0xff]
    %v1337 = vld [vmem:[#allocation2 + $0x48] sm:$0xff]
    %v1338 = vld [vmem:[#allocation2 + $0x50] sm:$0xff]
    %v1339 = vld [vmem:[#allocation2 + $0x58] sm:$0xff]
    %v1340 = vld [vmem:[#allocation2 + $0x60] sm:$0xff]
    %v1341 = vld [vmem:[#allocation2 + $0x68] sm:$0xff]
    %v1342 = vld [vmem:[#allocation2 + $0x70] sm:$0xff]
    %v1343 = vld [vmem:[#allocation2 + $0x78] sm:$0xff]
    %v1344 = vld [vmem:[#allocation2 + $0x80] sm:$0xff]
    %v1345 = vld [vmem:[#allocation2 + $0x88] sm:$0xff]
    %v1346 = vld [vmem:[#allocation2 + $0x90] sm:$0xff]
    %v1347 = vld [vmem:[#allocation2 + $0x98] sm:$0xff]
    %v1348 = vld [vmem:[#allocation2 + $0xa0] sm:$0xff]
    %v1349 = vld [vmem:[#allocation2 + $0xa8] sm:$0xff]
    %v1350 = vld [vmem:[#allocation2 + $0xb0] sm:$0xff]
    %v1351 = vld [vmem:[#allocation2 + $0xb8] sm:$0xff]
    %v1352 = vld [vmem:[#allocation2 + $0xc0] sm:$0xff]
    %v1353 = vld [vmem:[#allocation2 + $0xc8] sm:$0xff]
    %v1354 = vld [vmem:[#allocation2 + $0xd0] sm:$0xff]
    %v1355 = vld [vmem:[#allocation2 + $0xd8] sm:$0xff]
    %v1356 = vld [vmem:[#allocation2 + $0xe0] sm:$0xff]
    %v1357 = vld [vmem:[#allocation2 + $0xe8] sm:$0xff]
    %v1358 = vld [vmem:[#allocation2 + $0xf0] sm:$0xff]
    %v1359 = vld [vmem:[#allocation2 + $0xf8] sm:$0xff]
    %v1360 = vld [vmem:[#allocation2 + $0x100] sm:$0xff]
    %v1361 = vld [vmem:[#allocation2 + $0x108] sm:$0xff]
    %v1362 = vld [vmem:[#allocation2 + $0x110] sm:$0xff]
    %v1363 = vld [vmem:[#allocation2 + $0x118] sm:$0xff]
    %v1364 = vld [vmem:[#allocation2 + $0x120] sm:$0xff]
    %v1365 = vld [vmem:[#allocation2 + $0x128] sm:$0xff]
    %v1366 = vld [vmem:[#allocation2 + $0x130] sm:$0xff]
    %v1367 = vld [vmem:[#allocation2 + $0x138] sm:$0xff]
    %v1368 = vld [vmem:[#allocation2 + $0x140] sm:$0xff]
    %v1369 = vld [vmem:[#allocation2 + $0x148] sm:$0xff]
    %v1370 = vld [vmem:[#allocation2 + $0x150] sm:$0xff]
    %v1371 = vld [vmem:[#allocation2 + $0x158] sm:$0xff]
    %v1372 = vld [vmem:[#allocation2 + $0x160] sm:$0xff]
    %v1373 = vld [vmem:[#allocation2 + $0x168] sm:$0xff]
    %v1374 = vld [vmem:[#allocation2 + $0x170] sm:$0xff]
    %v1375 = vld [vmem:[#allocation2 + $0x178] sm:$0xff]
    %v1376 = vld [vmem:[#allocation2 + $0x180] sm:$0xff]
    %v1377 = vld [vmem:[#allocation2 + $0x188] sm:$0xff]
    %v1378 = vld [vmem:[#allocation2 + $0x190] sm:$0xff]
    %v1379 = vld [vmem:[#allocation2 + $0x198] sm:$0xff]
    %v1380 = vld [vmem:[#allocation2 + $0x1a0] sm:$0xff]
    %v1381 = vld [vmem:[#allocation2 + $0x1a8] sm:$0xff]
    %v1382 = vld [vmem:[#allocation2 + $0x1b0] sm:$0xff]
    %v1383 = vld [vmem:[#allocation2 + $0x1b8] sm:$0xff]
    %v1384 = vld [vmem:[#allocation2 + $0x1c0] sm:$0xff]
    %v1385 = vld [vmem:[#allocation2 + $0x1c8] sm:$0xff]
    %v1386 = vld [vmem:[#allocation2 + $0x1d0] sm:$0xff]
    %v1387 = vld [vmem:[#allocation2 + $0x1d8] sm:$0xff]
    %v1388 = vld [vmem:[#allocation2 + $0x1e0] sm:$0xff]
    %v1389 = vld [vmem:[#allocation2 + $0x1e8] sm:$0xff]
    %v1390 = vld [vmem:[#allocation2 + $0x1f0] sm:$0xff]
    %v1391 = vld [vmem:[#allocation2 + $0x1f8] sm:$0xff]
    %v1392 = vld [vmem:[#allocation2 + $0x200] sm:$0xff]
    %v1393 = vld [vmem:[#allocation2 + $0x208] sm:$0xff]
    %v1394 = vld [vmem:[#allocation2 + $0x210] sm:$0xff]
    %v1395 = vld [vmem:[#allocation2 + $0x218] sm:$0xff]
    %v1396 = vld [vmem:[#allocation2 + $0x220] sm:$0xff]
    %v1397 = vld [vmem:[#allocation2 + $0x228] sm:$0xff]
    %v1398 = vld [vmem:[#allocation2 + $0x230] sm:$0xff]
    %v1399 = vld [vmem:[#allocation2 + $0x238] sm:$0xff]
    %v1400 = vld [vmem:[#allocation2 + $0x240] sm:$0xff]
    %v1401 = vld [vmem:[#allocation2 + $0x248] sm:$0xff]
    %v1402 = vld [vmem:[#allocation2 + $0x250] sm:$0xff]
    %v1403 = vld [vmem:[#allocation2 + $0x258] sm:$0xff]
    %v1404 = vld [vmem:[#allocation2 + $0x260] sm:$0xff]
    %v1405 = vld [vmem:[#allocation2 + $0x268] sm:$0xff]
    %v1406 = vld [vmem:[#allocation2 + $0x270] sm:$0xff]
    %v1407 = vld [vmem:[#allocation2 + $0x278] sm:$0xff]
    %v1408 = vld [vmem:[#allocation2 + $0x280] sm:$0xff]
    %v1409 = vld [vmem:[#allocation2 + $0x288] sm:$0xff]
    %v1410 = vld [vmem:[#allocation2 + $0x290] sm:$0xff]
    %v1411 = vld [vmem:[#allocation2 + $0x298] sm:$0xff]
    %v1412 = vld [vmem:[#allocation2 + $0x2a0] sm:$0xff]
    %v1413 = vld [vmem:[#allocation2 + $0x2a8] sm:$0xff]
    %v1414 = vld [vmem:[#allocation2 + $0x2b0] sm:$0xff]
    %v1415 = vld [vmem:[#allocation2 + $0x2b8] sm:$0xff]
    %v1416 = vld [vmem:[#allocation2 + $0x2c0] sm:$0xff]
    %v1417 = vld [vmem:[#allocation2 + $0x2c8] sm:$0xff]
    %v1418 = vld [vmem:[#allocation2 + $0x2d0] sm:$0xff]
    %v1419 = vld [vmem:[#allocation2 + $0x2d8] sm:$0xff]
    %v1420 = vld [vmem:[#allocation2 + $0x2e0] sm:$0xff]
    %v1421 = vld [vmem:[#allocation2 + $0x2e8] sm:$0xff]
    %v1422 = vld [vmem:[#allocation2 + $0x2f0] sm:$0xff]
    %v1423 = vld [vmem:[#allocation2 + $0x2f8] sm:$0xff]
    %v1424 = vld [vmem:[#allocation2 + $0x300] sm:$0xff]
    %v1425 = vld [vmem:[#allocation2 + $0x308] sm:$0xff]
    %v1426 = vld [vmem:[#allocation2 + $0x310] sm:$0xff]
    %v1427 = vld [vmem:[#allocation2 + $0x318] sm:$0xff]
    %v1428 = vld [vmem:[#allocation2 + $0x320] sm:$0xff]
    %v1429 = vld [vmem:[#allocation2 + $0x328] sm:$0xff]
    %v1430 = vld [vmem:[#allocation2 + $0x330] sm:$0xff]
    %v1431 = vld [vmem:[#allocation2 + $0x338] sm:$0xff]
    %v1432 = vld [vmem:[#allocation2 + $0x340] sm:$0xff]
    %v1433 = vld [vmem:[#allocation2 + $0x348] sm:$0xff]
    %v1434 = vld [vmem:[#allocation2 + $0x350] sm:$0xff]
    %v1435 = vld [vmem:[#allocation2 + $0x358] sm:$0xff]
    %v1436 = vld [vmem:[#allocation2 + $0x360] sm:$0xff]
    %v1437 = vld [vmem:[#allocation2 + $0x368] sm:$0xff]
    %v1438 = vld [vmem:[#allocation2 + $0x370] sm:$0xff]
    %v1439 = vld [vmem:[#allocation2 + $0x378] sm:$0xff]
    %v1440 = vld [vmem:[#allocation2 + $0x380] sm:$0xff]
    %v1441 = vld [vmem:[#allocation2 + $0x388] sm:$0xff]
    %v1442 = vld [vmem:[#allocation2 + $0x390] sm:$0xff]
    %v1443 = vld [vmem:[#allocation2 + $0x398] sm:$0xff]
    %v1444 = vld [vmem:[#allocation2 + $0x3a0] sm:$0xff]
    %v1445 = vld [vmem:[#allocation2 + $0x3a8] sm:$0xff]
    %v1446 = vld [vmem:[#allocation2 + $0x3b0] sm:$0xff]
    %v1447 = vld [vmem:[#allocation2 + $0x3b8] sm:$0xff]
    %v1448 = vld [vmem:[#allocation2 + $0x3c0] sm:$0xff]
    %v1449 = vld [vmem:[#allocation2 + $0x3c8] sm:$0xff]
    %v1450 = vld [vmem:[#allocation2 + $0x3d0] sm:$0xff]
    %v1451 = vld [vmem:[#allocation2 + $0x3d8] sm:$0xff]
    %v1452 = vld [vmem:[#allocation2 + $0x3e0] sm:$0xff]
    %v1453 = vld [vmem:[#allocation2 + $0x3e8] sm:$0xff]
    %v1454 = vld [vmem:[#allocation2 + $0x3f0] sm:$0xff]
    %v1455 = vld [vmem:[#allocation2 + $0x3f8] sm:$0xff]
    %v1456 = vld [vmem:[#allocation2 + $0x400] sm:$0xff]
    %v1457 = vld [vmem:[#allocation2 + $0x408] sm:$0xff]
    %v1458 = vld [vmem:[#allocation2 + $0x410] sm:$0xff]
    %v1459 = vld [vmem:[#allocation2 + $0x418] sm:$0xff]
    %v1460 = vld [vmem:[#allocation2 + $0x420] sm:$0xff]
    %v1461 = vld [vmem:[#allocation2 + $0x428] sm:$0xff]
    %v1462 = vld [vmem:[#allocation2 + $0x430] sm:$0xff]
    %v1463 = vld [vmem:[#allocation2 + $0x438] sm:$0xff]
    %v1464 = vld [vmem:[#allocation2 + $0x440] sm:$0xff]
    %v1465 = vld [vmem:[#allocation2 + $0x448] sm:$0xff]
    %v1466 = vld [vmem:[#allocation2 + $0x450] sm:$0xff]
    %v1467 = vld [vmem:[#allocation2 + $0x458] sm:$0xff]
    %v1468 = vld [vmem:[#allocation2 + $0x460] sm:$0xff]
    %v1469 = vld [vmem:[#allocation2 + $0x468] sm:$0xff]
    %v1470 = vld [vmem:[#allocation2 + $0x470] sm:$0xff]
    %v1471 = vld [vmem:[#allocation2 + $0x478] sm:$0xff]
    %v1472 = vld [vmem:[#allocation2 + $0x480] sm:$0xff]
    %v1473 = vld [vmem:[#allocation2 + $0x488] sm:$0xff]
    %v1474 = vld [vmem:[#allocation2 + $0x490] sm:$0xff]
    %v1475 = vld [vmem:[#allocation2 + $0x498] sm:$0xff]
    %v1476 = vld [vmem:[#allocation2 + $0x4a0] sm:$0xff]
    %v1477 = vld [vmem:[#allocation2 + $0x4a8] sm:$0xff]
    %v1478 = vld [vmem:[#allocation2 + $0x4b0] sm:$0xff]
    %v1479 = vld [vmem:[#allocation2 + $0x4b8] sm:$0xff]
    %v1480 = vld [vmem:[#allocation2 + $0x4c0] sm:$0xff]
    %v1481 = vld [vmem:[#allocation2 + $0x4c8] sm:$0xff]
    %v1482 = vld [vmem:[#allocation2 + $0x4d0] sm:$0xff]
    %v1483 = vld [vmem:[#allocation2 + $0x4d8] sm:$0xff]
    %v1484 = vld [vmem:[#allocation2 + $0x4e0] sm:$0xff]
    %v1485 = vld [vmem:[#allocation2 + $0x4e8] sm:$0xff]
    %v1486 = vld [vmem:[#allocation2 + $0x4f0] sm:$0xff]
    %v1487 = vld [vmem:[#allocation2 + $0x4f8] sm:$0xff]
    %v1488 = vld [vmem:[#allocation2 + $0x500] sm:$0xff]
    %v1489 = vld [vmem:[#allocation2 + $0x508] sm:$0xff]
    %v1490 = vld [vmem:[#allocation2 + $0x510] sm:$0xff]
    %v1491 = vld [vmem:[#allocation2 + $0x518] sm:$0xff]
    %v1492 = vld [vmem:[#allocation2 + $0x520] sm:$0xff]
    %v1493 = vld [vmem:[#allocation2 + $0x528] sm:$0xff]
    %v1494 = vld [vmem:[#allocation2 + $0x530] sm:$0xff]
    %v1495 = vld [vmem:[#allocation2 + $0x538] sm:$0xff]
    %v1496 = vld [vmem:[#allocation2 + $0x540] sm:$0xff]
    %v1497 = vld [vmem:[#allocation2 + $0x548] sm:$0xff]
    %v1498 = vld [vmem:[#allocation2 + $0x550] sm:$0xff]
    %v1499 = vld [vmem:[#allocation2 + $0x558] sm:$0xff]
    %v1500 = vld [vmem:[#allocation2 + $0x560] sm:$0xff]
    %v1501 = vld [vmem:[#allocation2 + $0x568] sm:$0xff]
    %v1502 = vld [vmem:[#allocation2 + $0x570] sm:$0xff]
    %v1503 = vld [vmem:[#allocation2 + $0x578] sm:$0xff]
    %v1504 = vld [vmem:[#allocation2 + $0x580] sm:$0xff]
    %v1505 = vld [vmem:[#allocation2 + $0x588] sm:$0xff]
    %v1506 = vld [vmem:[#allocation2 + $0x590] sm:$0xff]
    %v1507 = vld [vmem:[#allocation2 + $0x598] sm:$0xff]
    %v1508 = vld [vmem:[#allocation2 + $0x5a0] sm:$0xff]
    %v1509 = vld [vmem:[#allocation2 + $0x5a8] sm:$0xff]
    %v1510 = vld [vmem:[#allocation2 + $0x5b0] sm:$0xff]
    %v1511 = vld [vmem:[#allocation2 + $0x5b8] sm:$0xff]
    %v1512 = vld [vmem:[#allocation2 + $0x5c0] sm:$0xff]
    %v1513 = vld [vmem:[#allocation2 + $0x5c8] sm:$0xff]
    %v1514 = vld [vmem:[#allocation2 + $0x5d0] sm:$0xff]
    %v1515 = vld [vmem:[#allocation2 + $0x5d8] sm:$0xff]
    %v1516 = vld [vmem:[#allocation2 + $0x5e0] sm:$0xff]
    %v1517 = vld [vmem:[#allocation2 + $0x5e8] sm:$0xff]
    %v1518 = vld [vmem:[#allocation2 + $0x5f0] sm:$0xff]
    %v1519 = vld [vmem:[#allocation2 + $0x5f8] sm:$0xff]
    %v1520 = vld [vmem:[#allocation2 + $0x600] sm:$0xff]
    %v1521 = vld [vmem:[#allocation2 + $0x608] sm:$0xff]
    %v1522 = vld [vmem:[#allocation2 + $0x610] sm:$0xff]
    %v1523 = vld [vmem:[#allocation2 + $0x618] sm:$0xff]
    %v1524 = vld [vmem:[#allocation2 + $0x620] sm:$0xff]
    %v1525 = vld [vmem:[#allocation2 + $0x628] sm:$0xff]
    %v1526 = vld [vmem:[#allocation2 + $0x630] sm:$0xff]
    %v1527 = vld [vmem:[#allocation2 + $0x638] sm:$0xff]
    %v1528 = vld [vmem:[#allocation2 + $0x640] sm:$0xff]
    %v1529 = vld [vmem:[#allocation2 + $0x648] sm:$0xff]
    %v1530 = vld [vmem:[#allocation2 + $0x650] sm:$0xff]
    %v1531 = vld [vmem:[#allocation2 + $0x658] sm:$0xff]
    %v1532 = vld [vmem:[#allocation2 + $0x660] sm:$0xff]
    %v1533 = vld [vmem:[#allocation2 + $0x668] sm:$0xff]
    %v1534 = vld [vmem:[#allocation2 + $0x670] sm:$0xff]
    %v1535 = vld [vmem:[#allocation2 + $0x678] sm:$0xff]
    %v1536 = vld [vmem:[#allocation2 + $0x680] sm:$0xff]
    %v1537 = vld [vmem:[#allocation2 + $0x688] sm:$0xff]
    %v1538 = vld [vmem:[#allocation2 + $0x690] sm:$0xff]
    %v1539 = vld [vmem:[#allocation2 + $0x698] sm:$0xff]
    %v1540 = vld [vmem:[#allocation2 + $0x6a0] sm:$0xff]
    %v1541 = vld [vmem:[#allocation2 + $0x6a8] sm:$0xff]
    %v1542 = vld [vmem:[#allocation2 + $0x6b0] sm:$0xff]
    %v1543 = vld [vmem:[#allocation2 + $0x6b8] sm:$0xff]
    %v1544 = vld [vmem:[#allocation2 + $0x6c0] sm:$0xff]
    %v1545 = vld [vmem:[#allocation2 + $0x6c8] sm:$0xff]
    %v1546 = vld [vmem:[#allocation2 + $0x6d0] sm:$0xff]
    %v1547 = vld [vmem:[#allocation2 + $0x6d8] sm:$0xff]
    %v1548 = vld [vmem:[#allocation2 + $0x6e0] sm:$0xff]
    %v1549 = vld [vmem:[#allocation2 + $0x6e8] sm:$0xff]
    %v1550 = vld [vmem:[#allocation2 + $0x6f0] sm:$0xff]
    %v1551 = vld [vmem:[#allocation2 + $0x6f8] sm:$0xff]
    %v1552 = vld [vmem:[#allocation2 + $0x700] sm:$0xff]
    %v1553 = vld [vmem:[#allocation2 + $0x708] sm:$0xff]
    %v1554 = vld [vmem:[#allocation2 + $0x710] sm:$0xff]
    %v1555 = vld [vmem:[#allocation2 + $0x718] sm:$0xff]
    %v1556 = vld [vmem:[#allocation2 + $0x720] sm:$0xff]
    %v1557 = vld [vmem:[#allocation2 + $0x728] sm:$0xff]
    %v1558 = vld [vmem:[#allocation2 + $0x730] sm:$0xff]
    %v1559 = vld [vmem:[#allocation2 + $0x738] sm:$0xff]
    %v1560 = vld [vmem:[#allocation2 + $0x740] sm:$0xff]
    %v1561 = vld [vmem:[#allocation2 + $0x748] sm:$0xff]
    %v1562 = vld [vmem:[#allocation2 + $0x750] sm:$0xff]
    %v1563 = vld [vmem:[#allocation2 + $0x758] sm:$0xff]
    %v1564 = vld [vmem:[#allocation2 + $0x760] sm:$0xff]
    %v1565 = vld [vmem:[#allocation2 + $0x768] sm:$0xff]
    %v1566 = vld [vmem:[#allocation2 + $0x770] sm:$0xff]
    %v1567 = vld [vmem:[#allocation2 + $0x778] sm:$0xff]
    %v1568 = vld [vmem:[#allocation2 + $0x780] sm:$0xff]
    %v1569 = vld [vmem:[#allocation2 + $0x788] sm:$0xff]
    %v1570 = vld [vmem:[#allocation2 + $0x790] sm:$0xff]
    %v1571 = vld [vmem:[#allocation2 + $0x798] sm:$0xff]
    %v1572 = vld [vmem:[#allocation2 + $0x7a0] sm:$0xff]
    %v1573 = vld [vmem:[#allocation2 + $0x7a8] sm:$0xff]
    %v1574 = vld [vmem:[#allocation2 + $0x7b0] sm:$0xff]
    %v1575 = vld [vmem:[#allocation2 + $0x7b8] sm:$0xff]
    %v1576 = vld [vmem:[#allocation2 + $0x7c0] sm:$0xff]
    %v1577 = vld [vmem:[#allocation2 + $0x7c8] sm:$0xff]
    %v1578 = vld [vmem:[#allocation2 + $0x7d0] sm:$0xff]
    %v1579 = vld [vmem:[#allocation2 + $0x7d8] sm:$0xff]
    %v1580 = vld [vmem:[#allocation2 + $0x7e0] sm:$0xff]
    %v1581 = vld [vmem:[#allocation2 + $0x7e8] sm:$0xff]
    %v1582 = vld [vmem:[#allocation2 + $0x7f0] sm:$0xff]
    %v1583 = vld [vmem:[#allocation2 + $0x7f8] sm:$0xff]
    %v1584 = vld [vmem:[%s12] sm:$0xff]
    %v1586 = vlaneseq
    %v1587 = vshrl.u32 %v1586, 7
    %v1588 = vsub.s32 0, %v1587
    %v1589 = vrot.slane %v1584, %v1588
    %v1590 = vlaneseq
    %v1591 = vshrl.u32 %v1590, 7
    %v1592 = vsub.s32 1, %v1591
    %v1593 = vrot.slane %v1584, %v1592
    %v1594 = vlaneseq
    %v1595 = vshrl.u32 %v1594, 7
    %v1596 = vsub.s32 2, %v1595
    %v1597 = vrot.slane %v1584, %v1596
    %v1598 = vlaneseq
    %v1599 = vshrl.u32 %v1598, 7
    %v1600 = vsub.s32 3, %v1599
    %v1601 = vrot.slane %v1584, %v1600
    %v1602 = vlaneseq
    %v1603 = vshrl.u32 %v1602, 7
    %v1604 = vsub.s32 4, %v1603
    %v1605 = vrot.slane %v1584, %v1604
    %v1606 = vlaneseq
    %v1607 = vshrl.u32 %v1606, 7
    %v1608 = vsub.s32 5, %v1607
    %v1609 = vrot.slane %v1584, %v1608
    %v1610 = vlaneseq
    %v1611 = vshrl.u32 %v1610, 7
    %v1612 = vsub.s32 6, %v1611
    %v1613 = vrot.slane %v1584, %v1612
    %v1614 = vlaneseq
    %v1615 = vshrl.u32 %v1614, 7
    %v1616 = vsub.s32 7, %v1615
    %v1617 = vrot.slane %v1584, %v1616
    %1626 = vmatprep.subr.bf16.mxu0 %v1329
    %1627 = vmatpush1.bf16.msra.mxu0 %v1328
    %1628 = vmatprep.subr.bf16.mxu0 %v1337
    %1629 = vmatpush1.bf16.msra.mxu0 %v1336
    %1630 = vmatprep.subr.bf16.mxu0 %v1345
    %1631 = vmatpush1.bf16.msra.mxu0 %v1344
    %1632 = vmatprep.subr.bf16.mxu0 %v1353
    %1633 = vmatpush1.bf16.msra.mxu0 %v1352
    %1634 = vmatprep.subr.bf16.mxu0 %v1361
    %1635 = vmatpush1.bf16.msra.mxu0 %v1360
    %1636 = vmatprep.subr.bf16.mxu0 %v1369
    %1637 = vmatpush1.bf16.msra.mxu0 %v1368
    %1638 = vmatprep.subr.bf16.mxu0 %v1377
    %1639 = vmatpush1.bf16.msra.mxu0 %v1376
    %1640 = vmatprep.subr.bf16.mxu0 %v1385
    %1641 = vmatpush1.bf16.msra.mxu0 %v1384
    %1642 = vmatprep.subr.bf16.mxu0 %v1393
    %1643 = vmatpush1.bf16.msra.mxu0 %v1392
    %1644 = vmatprep.subr.bf16.mxu0 %v1401
    %1645 = vmatpush1.bf16.msra.mxu0 %v1400
    %1646 = vmatprep.subr.bf16.mxu0 %v1409
    %1647 = vmatpush1.bf16.msra.mxu0 %v1408
    %1648 = vmatprep.subr.bf16.mxu0 %v1417
    %1649 = vmatpush1.bf16.msra.mxu0 %v1416
    %1650 = vmatprep.subr.bf16.mxu0 %v1425
    %1651 = vmatpush1.bf16.msra.mxu0 %v1424
    %1652 = vmatprep.subr.bf16.mxu0 %v1433
    %1653 = vmatpush1.bf16.msra.mxu0 %v1432
    %1654 = vmatprep.subr.bf16.mxu0 %v1441
    %1655 = vmatpush1.bf16.msra.mxu0 %v1440
    %1656 = vmatprep.subr.bf16.mxu0 %v1449
    %1657 = vmatpush1.bf16.msra.mxu0 %v1448
    %1658 = vmatprep.mubr.bf16.mxu0 %v1325
    %1659 = vmatmul.mubr.bf16.gmra.mrb[0].mxu0 %v1324
    %v1660 = vpop.f32.mrb[0].mxu0
    %v1661 = vadd.f32 %v1589, %v1660
    %v1662 = vpop.f32.mrb[0].mxu0
    %v1663 = vadd.f32 %v1593, %v1662
    %v1664 = vpop.f32.mrb[0].mxu0
    %v1665 = vadd.f32 %v1589, %v1664
    %v1666 = vpop.f32.mrb[0].mxu0
    %v1667 = vadd.f32 %v1593, %v1666
    %1668 = vdwg.mxu0
    %1669 = vmatprep.subr.bf16.mxu0 %v1457
    %1670 = vmatpush1.bf16.msra.mxu0 %v1456
    %1671 = vmatprep.subr.bf16.mxu0 %v1465
    %1672 = vmatpush1.bf16.msra.mxu0 %v1464
    %1673 = vmatprep.subr.bf16.mxu0 %v1473
    %1674 = vmatpush1.bf16.msra.mxu0 %v1472
    %1675 = vmatprep.subr.bf16.mxu0 %v1481
    %1676 = vmatpush1.bf16.msra.mxu0 %v1480
    %1677 = vmatprep.subr.bf16.mxu0 %v1489
    %1678 = vmatpush1.bf16.msra.mxu0 %v1488
    %1679 = vmatprep.subr.bf16.mxu0 %v1497
    %1680 = vmatpush1.bf16.msra.mxu0 %v1496
    %1681 = vmatprep.subr.bf16.mxu0 %v1505
    %1682 = vmatpush1.bf16.msra.mxu0 %v1504
    %1683 = vmatprep.subr.bf16.mxu0 %v1513
    %1684 = vmatpush1.bf16.msra.mxu0 %v1512
    %1685 = vmatprep.subr.bf16.mxu0 %v1521
    %1686 = vmatpush1.bf16.msra.mxu0 %v1520
    %1687 = vmatprep.subr.bf16.mxu0 %v1529
    %1688 = vmatpush1.bf16.msra.mxu0 %v1528
    %1689 = vmatprep.subr.bf16.mxu0 %v1537
    %1690 = vmatpush1.bf16.msra.mxu0 %v1536
    %1691 = vmatprep.subr.bf16.mxu0 %v1545
    %1692 = vmatpush1.bf16.msra.mxu0 %v1544
    %1693 = vmatprep.subr.bf16.mxu0 %v1553
    %1694 = vmatpush1.bf16.msra.mxu0 %v1552
    %1695 = vmatprep.subr.bf16.mxu0 %v1561
    %1696 = vmatpush1.bf16.msra.mxu0 %v1560
    %1697 = vmatprep.subr.bf16.mxu0 %v1569
    %1698 = vmatpush1.bf16.msra.mxu0 %v1568
    %1699 = vmatprep.subr.bf16.mxu0 %v1577
    %1700 = vmatpush1.bf16.msra.mxu0 %v1576
    %1701 = vmatprep.mubr.bf16.mxu0 %v1327
    %1702 = vmatmul.mubr.bf16.gmra.mrb[0].mxu0 %v1326
    %v1703 = vpop.f32.mrb[0].mxu0
    %v1704 = vadd.f32 %v1661, %v1703
    %v1705 = vpop.f32.mrb[0].mxu0
    %v1706 = vadd.f32 %v1663, %v1705
    %v1707 = vpop.f32.mrb[0].mxu0
    %v1708 = vadd.f32 %v1665, %v1707
    %v1709 = vpop.f32.mrb[0].mxu0
    %v1710 = vadd.f32 %v1667, %v1709
    %1711 = vdwg.mxu0
    %1712 = vmatprep.subr.bf16.mxu0 %v1331
    %1713 = vmatpush1.bf16.msra.mxu0 %v1330
    %1714 = vmatprep.subr.bf16.mxu0 %v1339
    %1715 = vmatpush1.bf16.msra.mxu0 %v1338
    %1716 = vmatprep.subr.bf16.mxu0 %v1347
    %1717 = vmatpush1.bf16.msra.mxu0 %v1346
    %1718 = vmatprep.subr.bf16.mxu0 %v1355
    %1719 = vmatpush1.bf16.msra.mxu0 %v1354
    %1720 = vmatprep.subr.bf16.mxu0 %v1363
    %1721 = vmatpush1.bf16.msra.mxu0 %v1362
    %1722 = vmatprep.subr.bf16.mxu0 %v1371
    %1723 = vmatpush1.bf16.msra.mxu0 %v1370
    %1724 = vmatprep.subr.bf16.mxu0 %v1379
    %1725 = vmatpush1.bf16.msra.mxu0 %v1378
    %1726 = vmatprep.subr.bf16.mxu0 %v1387
    %1727 = vmatpush1.bf16.msra.mxu0 %v1386
    %1728 = vmatprep.subr.bf16.mxu0 %v1395
    %1729 = vmatpush1.bf16.msra.mxu0 %v1394
    %1730 = vmatprep.subr.bf16.mxu0 %v1403
    %1731 = vmatpush1.bf16.msra.mxu0 %v1402
    %1732 = vmatprep.subr.bf16.mxu0 %v1411
    %1733 = vmatpush1.bf16.msra.mxu0 %v1410
    %1734 = vmatprep.subr.bf16.mxu0 %v1419
    %1735 = vmatpush1.bf16.msra.mxu0 %v1418
    %1736 = vmatprep.subr.bf16.mxu0 %v1427
    %1737 = vmatpush1.bf16.msra.mxu0 %v1426
    %1738 = vmatprep.subr.bf16.mxu0 %v1435
    %1739 = vmatpush1.bf16.msra.mxu0 %v1434
    %1740 = vmatprep.subr.bf16.mxu0 %v1443
    %1741 = vmatpush1.bf16.msra.mxu0 %v1442
    %1742 = vmatprep.subr.bf16.mxu0 %v1451
    %1743 = vmatpush1.bf16.msra.mxu0 %v1450
    %1744 = vmatprep.mubr.bf16.mxu0 %v1325
    %1745 = vmatmul.mubr.bf16.gmra.mrb[0].mxu0 %v1324
    %v1746 = vpop.f32.mrb[0].mxu0
    %v1747 = vadd.f32 %v1597, %v1746
    %v1748 = vpop.f32.mrb[0].mxu0
    %v1749 = vadd.f32 %v1601, %v1748
    %v1750 = vpop.f32.mrb[0].mxu0
    %v1751 = vadd.f32 %v1597, %v1750
    %v1752 = vpop.f32.mrb[0].mxu0
    %v1753 = vadd.f32 %v1601, %v1752
    %1754 = vdwg.mxu0
    %1755 = vmatprep.subr.bf16.mxu0 %v1459
    %1756 = vmatpush1.bf16.msra.mxu0 %v1458
    %1757 = vmatprep.subr.bf16.mxu0 %v1467
    %1758 = vmatpush1.bf16.msra.mxu0 %v1466
    %1759 = vmatprep.subr.bf16.mxu0 %v1475
    %1760 = vmatpush1.bf16.msra.mxu0 %v1474
    %1761 = vmatprep.subr.bf16.mxu0 %v1483
    %1762 = vmatpush1.bf16.msra.mxu0 %v1482
    %1763 = vmatprep.subr.bf16.mxu0 %v1491
    %1764 = vmatpush1.bf16.msra.mxu0 %v1490
    %1765 = vmatprep.subr.bf16.mxu0 %v1499
    %1766 = vmatpush1.bf16.msra.mxu0 %v1498
    %1767 = vmatprep.subr.bf16.mxu0 %v1507
    %1768 = vmatpush1.bf16.msra.mxu0 %v1506
    %1769 = vmatprep.subr.bf16.mxu0 %v1515
    %1770 = vmatpush1.bf16.msra.mxu0 %v1514
    %1771 = vmatprep.subr.bf16.mxu0 %v1523
    %1772 = vmatpush1.bf16.msra.mxu0 %v1522
    %1773 = vmatprep.subr.bf16.mxu0 %v1531
    %1774 = vmatpush1.bf16.msra.mxu0 %v1530
    %1775 = vmatprep.subr.bf16.mxu0 %v1539
    %1776 = vmatpush1.bf16.msra.mxu0 %v1538
    %1777 = vmatprep.subr.bf16.mxu0 %v1547
    %1778 = vmatpush1.bf16.msra.mxu0 %v1546
    %1779 = vmatprep.subr.bf16.mxu0 %v1555
    %1780 = vmatpush1.bf16.msra.mxu0 %v1554
    %1781 = vmatprep.subr.bf16.mxu0 %v1563
    %1782 = vmatpush1.bf16.msra.mxu0 %v1562
    %1783 = vmatprep.subr.bf16.mxu0 %v1571
    %1784 = vmatpush1.bf16.msra.mxu0 %v1570
    %1785 = vmatprep.subr.bf16.mxu0 %v1579
    %1786 = vmatpush1.bf16.msra.mxu0 %v1578
    %1787 = vmatprep.mubr.bf16.mxu0 %v1327
    %1788 = vmatmul.mubr.bf16.gmra.mrb[0].mxu0 %v1326
    %v1789 = vpop.f32.mrb[0].mxu0
    %v1790 = vadd.f32 %v1747, %v1789
    %v1791 = vpop.f32.mrb[0].mxu0
    %v1792 = vadd.f32 %v1749, %v1791
    %v1793 = vpop.f32.mrb[0].mxu0
    %v1794 = vadd.f32 %v1751, %v1793
    %v1795 = vpop.f32.mrb[0].mxu0
    %v1796 = vadd.f32 %v1753, %v1795
    %1797 = vdwg.mxu0
    %1798 = vmatprep.subr.bf16.mxu0 %v1333
    %1799 = vmatpush1.bf16.msra.mxu0 %v1332
    %1800 = vmatprep.subr.bf16.mxu0 %v1341
    %1801 = vmatpush1.bf16.msra.mxu0 %v1340
    %1802 = vmatprep.subr.bf16.mxu0 %v1349
    %1803 = vmatpush1.bf16.msra.mxu0 %v1348
    %1804 = vmatprep.subr.bf16.mxu0 %v1357
    %1805 = vmatpush1.bf16.msra.mxu0 %v1356
    %1806 = vmatprep.subr.bf16.mxu0 %v1365
    %1807 = vmatpush1.bf16.msra.mxu0 %v1364
    %1808 = vmatprep.subr.bf16.mxu0 %v1373
    %1809 = vmatpush1.bf16.msra.mxu0 %v1372
    %1810 = vmatprep.subr.bf16.mxu0 %v1381
    %1811 = vmatpush1.bf16.msra.mxu0 %v1380
    %1812 = vmatprep.subr.bf16.mxu0 %v1389
    %1813 = vmatpush1.bf16.msra.mxu0 %v1388
    %1814 = vmatprep.subr.bf16.mxu0 %v1397
    %1815 = vmatpush1.bf16.msra.mxu0 %v1396
    %1816 = vmatprep.subr.bf16.mxu0 %v1405
    %1817 = vmatpush1.bf16.msra.mxu0 %v1404
    %1818 = vmatprep.subr.bf16.mxu0 %v1413
    %1819 = vmatpush1.bf16.msra.mxu0 %v1412
    %1820 = vmatprep.subr.bf16.mxu0 %v1421
    %1821 = vmatpush1.bf16.msra.mxu0 %v1420
    %1822 = vmatprep.subr.bf16.mxu0 %v1429
    %1823 = vmatpush1.bf16.msra.mxu0 %v1428
    %1824 = vmatprep.subr.bf16.mxu0 %v1437
    %1825 = vmatpush1.bf16.msra.mxu0 %v1436
    %1826 = vmatprep.subr.bf16.mxu0 %v1445
    %1827 = vmatpush1.bf16.msra.mxu0 %v1444
    %1828 = vmatprep.subr.bf16.mxu0 %v1453
    %1829 = vmatpush1.bf16.msra.mxu0 %v1452
    %1830 = vmatprep.mubr.bf16.mxu0 %v1325
    %1831 = vmatmul.mubr.bf16.gmra.mrb[0].mxu0 %v1324
    %v1832 = vpop.f32.mrb[0].mxu0
    %v1833 = vadd.f32 %v1605, %v1832
    %v1834 = vpop.f32.mrb[0].mxu0
    %v1835 = vadd.f32 %v1609, %v1834
    %v1836 = vpop.f32.mrb[0].mxu0
    %v1837 = vadd.f32 %v1605, %v1836
    %v1838 = vpop.f32.mrb[0].mxu0
    %v1839 = vadd.f32 %v1609, %v1838
    %1840 = vdwg.mxu0
    %1841 = vmatprep.subr.bf16.mxu0 %v1461
    %1842 = vmatpush1.bf16.msra.mxu0 %v1460
    %1843 = vmatprep.subr.bf16.mxu0 %v1469
    %1844 = vmatpush1.bf16.msra.mxu0 %v1468
    %1845 = vmatprep.subr.bf16.mxu0 %v1477
    %1846 = vmatpush1.bf16.msra.mxu0 %v1476
    %1847 = vmatprep.subr.bf16.mxu0 %v1485
    %1848 = vmatpush1.bf16.msra.mxu0 %v1484
    %1849 = vmatprep.subr.bf16.mxu0 %v1493
    %1850 = vmatpush1.bf16.msra.mxu0 %v1492
    %1851 = vmatprep.subr.bf16.mxu0 %v1501
    %1852 = vmatpush1.bf16.msra.mxu0 %v1500
    %1853 = vmatprep.subr.bf16.mxu0 %v1509
    %1854 = vmatpush1.bf16.msra.mxu0 %v1508
    %1855 = vmatprep.subr.bf16.mxu0 %v1517
    %1856 = vmatpush1.bf16.msra.mxu0 %v1516
    %1857 = vmatprep.subr.bf16.mxu0 %v1525
    %1858 = vmatpush1.bf16.msra.mxu0 %v1524
    %1859 = vmatprep.subr.bf16.mxu0 %v1533
    %1860 = vmatpush1.bf16.msra.mxu0 %v1532
    %1861 = vmatprep.subr.bf16.mxu0 %v1541
    %1862 = vmatpush1.bf16.msra.mxu0 %v1540
    %1863 = vmatprep.subr.bf16.mxu0 %v1549
    %1864 = vmatpush1.bf16.msra.mxu0 %v1548
    %1865 = vmatprep.subr.bf16.mxu0 %v1557
    %1866 = vmatpush1.bf16.msra.mxu0 %v1556
    %1867 = vmatprep.subr.bf16.mxu0 %v1565
    %1868 = vmatpush1.bf16.msra.mxu0 %v1564
    %1869 = vmatprep.subr.bf16.mxu0 %v1573
    %1870 = vmatpush1.bf16.msra.mxu0 %v1572
    %1871 = vmatprep.subr.bf16.mxu0 %v1581
    %1872 = vmatpush1.bf16.msra.mxu0 %v1580
    %1873 = vmatprep.mubr.bf16.mxu0 %v1327
    %1874 = vmatmul.mubr.bf16.gmra.mrb[0].mxu0 %v1326
    %v1875 = vpop.f32.mrb[0].mxu0
    %v1876 = vadd.f32 %v1833, %v1875
    %v1877 = vpop.f32.mrb[0].mxu0
    %v1878 = vadd.f32 %v1835, %v1877
    %v1879 = vpop.f32.mrb[0].mxu0
    %v1880 = vadd.f32 %v1837, %v1879
    %v1881 = vpop.f32.mrb[0].mxu0
    %v1882 = vadd.f32 %v1839, %v1881
    %1883 = vdwg.mxu0
    %1884 = vmatprep.subr.bf16.mxu0 %v1335
    %1885 = vmatpush1.bf16.msra.mxu0 %v1334
    %1886 = vmatprep.subr.bf16.mxu0 %v1343
    %1887 = vmatpush1.bf16.msra.mxu0 %v1342
    %1888 = vmatprep.subr.bf16.mxu0 %v1351
    %1889 = vmatpush1.bf16.msra.mxu0 %v1350
    %1890 = vmatprep.subr.bf16.mxu0 %v1359
    %1891 = vmatpush1.bf16.msra.mxu0 %v1358
    %1892 = vmatprep.subr.bf16.mxu0 %v1367
    %1893 = vmatpush1.bf16.msra.mxu0 %v1366
    %1894 = vmatprep.subr.bf16.mxu0 %v1375
    %1895 = vmatpush1.bf16.msra.mxu0 %v1374
    %1896 = vmatprep.subr.bf16.mxu0 %v1383
    %1897 = vmatpush1.bf16.msra.mxu0 %v1382
    %1898 = vmatprep.subr.bf16.mxu0 %v1391
    %1899 = vmatpush1.bf16.msra.mxu0 %v1390
    %1900 = vmatprep.subr.bf16.mxu0 %v1399
    %1901 = vmatpush1.bf16.msra.mxu0 %v1398
    %1902 = vmatprep.subr.bf16.mxu0 %v1407
    %1903 = vmatpush1.bf16.msra.mxu0 %v1406
    %1904 = vmatprep.subr.bf16.mxu0 %v1415
    %1905 = vmatpush1.bf16.msra.mxu0 %v1414
    %1906 = vmatprep.subr.bf16.mxu0 %v1423
    %1907 = vmatpush1.bf16.msra.mxu0 %v1422
    %1908 = vmatprep.subr.bf16.mxu0 %v1431
    %1909 = vmatpush1.bf16.msra.mxu0 %v1430
    %1910 = vmatprep.subr.bf16.mxu0 %v1439
    %1911 = vmatpush1.bf16.msra.mxu0 %v1438
    %1912 = vmatprep.subr.bf16.mxu0 %v1447
    %1913 = vmatpush1.bf16.msra.mxu0 %v1446
    %1914 = vmatprep.subr.bf16.mxu0 %v1455
    %1915 = vmatpush1.bf16.msra.mxu0 %v1454
    %1916 = vmatprep.mubr.bf16.mxu0 %v1325
    %1917 = vmatmul.mubr.bf16.gmra.mrb[0].mxu0 %v1324
    %v1918 = vpop.f32.mrb[0].mxu0
    %v1919 = vadd.f32 %v1613, %v1918
    %v1920 = vpop.f32.mrb[0].mxu0
    %v1921 = vadd.f32 %v1617, %v1920
    %v1922 = vpop.f32.mrb[0].mxu0
    %v1923 = vadd.f32 %v1613, %v1922
    %v1924 = vpop.f32.mrb[0].mxu0
    %v1925 = vadd.f32 %v1617, %v1924
    %1926 = vdwg.mxu0
    %1927 = vmatprep.subr.bf16.mxu0 %v1463
    %1928 = vmatpush1.bf16.msra.mxu0 %v1462
    %1929 = vmatprep.subr.bf16.mxu0 %v1471
    %1930 = vmatpush1.bf16.msra.mxu0 %v1470
    %1931 = vmatprep.subr.bf16.mxu0 %v1479
    %1932 = vmatpush1.bf16.msra.mxu0 %v1478
    %1933 = vmatprep.subr.bf16.mxu0 %v1487
    %1934 = vmatpush1.bf16.msra.mxu0 %v1486
    %1935 = vmatprep.subr.bf16.mxu0 %v1495
    %1936 = vmatpush1.bf16.msra.mxu0 %v1494
    %1937 = vmatprep.subr.bf16.mxu0 %v1503
    %1938 = vmatpush1.bf16.msra.mxu0 %v1502
    %1939 = vmatprep.subr.bf16.mxu0 %v1511
    %1940 = vmatpush1.bf16.msra.mxu0 %v1510
    %1941 = vmatprep.subr.bf16.mxu0 %v1519
    %1942 = vmatpush1.bf16.msra.mxu0 %v1518
    %1943 = vmatprep.subr.bf16.mxu0 %v1527
    %1944 = vmatpush1.bf16.msra.mxu0 %v1526
    %1945 = vmatprep.subr.bf16.mxu0 %v1535
    %1946 = vmatpush1.bf16.msra.mxu0 %v1534
    %1947 = vmatprep.subr.bf16.mxu0 %v1543
    %1948 = vmatpush1.bf16.msra.mxu0 %v1542
    %1949 = vmatprep.subr.bf16.mxu0 %v1551
    %1950 = vmatpush1.bf16.msra.mxu0 %v1550
    %1951 = vmatprep.subr.bf16.mxu0 %v1559
    %1952 = vmatpush1.bf16.msra.mxu0 %v1558
    %1953 = vmatprep.subr.bf16.mxu0 %v1567
    %1954 = vmatpush1.bf16.msra.mxu0 %v1566
    %1955 = vmatprep.subr.bf16.mxu0 %v1575
    %1956 = vmatpush1.bf16.msra.mxu0 %v1574
    %1957 = vmatprep.subr.bf16.mxu0 %v1583
    %1958 = vmatpush1.bf16.msra.mxu0 %v1582
    %1959 = vmatprep.mubr.bf16.mxu0 %v1327
    %1960 = vmatmul.mubr.bf16.gmra.mrb[0].mxu0 %v1326
    %v1961 = vpop.f32.mrb[0].mxu0
    %v1962 = vadd.f32 %v1919, %v1961
    %v1963 = vpop.f32.mrb[0].mxu0
    %v1964 = vadd.f32 %v1921, %v1963
    %v1965 = vpop.f32.mrb[0].mxu0
    %v1966 = vadd.f32 %v1923, %v1965
    %v1967 = vpop.f32.mrb[0].mxu0
    %v1968 = vadd.f32 %v1925, %v1967
    %1969 = vdwg.mxu0
    %v1970 = vmul.f32 %v1704, %v197
    %v1971 = vmul.f32 %v1706, %v197
    %v1972 = vmul.f32 %v1790, %v197
    %v1973 = vmul.f32 %v1792, %v197
    %v1974 = vmul.f32 %v1876, %v197
    %v1975 = vmul.f32 %v1878, %v197
    %v1976 = vmul.f32 %v1962, %v197
    %v1977 = vmul.f32 %v1964, %v197
    %v1978 = vmul.f32 %v1708, %v198
    %v1979 = vmul.f32 %v1710, %v198
    %v1980 = vmul.f32 %v1794, %v198
    %v1981 = vmul.f32 %v1796, %v198
    %v1982 = vmul.f32 %v1880, %v198
    %v1983 = vmul.f32 %v1882, %v198
    %v1984 = vmul.f32 %v1966, %v198
    %v1985 = vmul.f32 %v1968, %v198
    %v1986 = vadd.f32 %v1970, %v1978
    %v1987 = vrot.slane %v1986, 4
    %v1988 = vadd.f32 %v1986, %v1987
    %v1989 = vrot.slane %v1988, 2
    %v1990 = vadd.f32 %v1988, %v1989
    %v1991 = vrot.slane %v1990, 1
    %v1992 = vadd.f32 %v1990, %v1991
    %v1993 = vadd.f32 %v1971, %v1979
    %v1994 = vrot.slane %v1993, 4
    %v1995 = vadd.f32 %v1993, %v1994
    %v1996 = vrot.slane %v1995, 2
    %v1997 = vadd.f32 %v1995, %v1996
    %v1998 = vrot.slane %v1997, 1
    %v1999 = vadd.f32 %v1997, %v1998
    %v2000 = vadd.f32 %v1972, %v1980
    %v2001 = vrot.slane %v2000, 4
    %v2002 = vadd.f32 %v2000, %v2001
    %v2003 = vrot.slane %v2002, 2
    %v2004 = vadd.f32 %v2002, %v2003
    %v2005 = vrot.slane %v2004, 1
    %v2006 = vadd.f32 %v2004, %v2005
    %v2007 = vadd.f32 %v1973, %v1981
    %v2008 = vrot.slane %v2007, 4
    %v2009 = vadd.f32 %v2007, %v2008
    %v2010 = vrot.slane %v2009, 2
    %v2011 = vadd.f32 %v2009, %v2010
    %v2012 = vrot.slane %v2011, 1
    %v2013 = vadd.f32 %v2011, %v2012
    %v2014 = vadd.f32 %v1974, %v1982
    %v2015 = vrot.slane %v2014, 4
    %v2016 = vadd.f32 %v2014, %v2015
    %v2017 = vrot.slane %v2016, 2
    %v2018 = vadd.f32 %v2016, %v2017
    %v2019 = vrot.slane %v2018, 1
    %v2020 = vadd.f32 %v2018, %v2019
    %v2021 = vadd.f32 %v1975, %v1983
    %v2022 = vrot.slane %v2021, 4
    %v2023 = vadd.f32 %v2021, %v2022
    %v2024 = vrot.slane %v2023, 2
    %v2025 = vadd.f32 %v2023, %v2024
    %v2026 = vrot.slane %v2025, 1
    %v2027 = vadd.f32 %v2025, %v2026
    %v2028 = vadd.f32 %v1976, %v1984
    %v2029 = vrot.slane %v2028, 4
    %v2030 = vadd.f32 %v2028, %v2029
    %v2031 = vrot.slane %v2030, 2
    %v2032 = vadd.f32 %v2030, %v2031
    %v2033 = vrot.slane %v2032, 1
    %v2034 = vadd.f32 %v2032, %v2033
    %v2035 = vadd.f32 %v1977, %v1985
    %v2036 = vrot.slane %v2035, 4
    %v2037 = vadd.f32 %v2035, %v2036
    %v2038 = vrot.slane %v2037, 2
    %v2039 = vadd.f32 %v2037, %v2038
    %v2040 = vrot.slane %v2039, 1
    %v2041 = vadd.f32 %v2039, %v2040
    %v2042 = vmul.f32 %v1992, 0.125
    %v2043 = vmul.f32 %v1999, 0.125
    %v2044 = vmul.f32 %v2006, 0.125
    %v2045 = vmul.f32 %v2013, 0.125
    %v2046 = vmul.f32 %v2020, 0.125
    %v2047 = vmul.f32 %v2027, 0.125
    %v2048 = vmul.f32 %v2034, 0.125
    %v2049 = vmul.f32 %v2041, 0.125
    %v2050 = vmul.f32 %v1970, %v1970
    %v2051 = vmul.f32 %v1971, %v1971
    %v2052 = vmul.f32 %v1972, %v1972
    %v2053 = vmul.f32 %v1973, %v1973
    %v2054 = vmul.f32 %v1974, %v1974
    %v2055 = vmul.f32 %v1975, %v1975
    %v2056 = vmul.f32 %v1976, %v1976
    %v2057 = vmul.f32 %v1977, %v1977
    %v2058 = vmul.f32 %v1978, %v1978
    %v2059 = vmul.f32 %v1979, %v1979
    %v2060 = vmul.f32 %v1980, %v1980
    %v2061 = vmul.f32 %v1981, %v1981
    %v2062 = vmul.f32 %v1982, %v1982
    %v2063 = vmul.f32 %v1983, %v1983
    %v2064 = vmul.f32 %v1984, %v1984
    %v2065 = vmul.f32 %v1985, %v1985
    %v2066 = vadd.f32 %v2050, %v2058
    %v2067 = vrot.slane %v2066, 4
    %v2068 = vadd.f32 %v2066, %v2067
    %v2069 = vrot.slane %v2068, 2
    %v2070 = vadd.f32 %v2068, %v2069
    %v2071 = vrot.slane %v2070, 1
    %v2072 = vadd.f32 %v2070, %v2071
    %v2073 = vadd.f32 %v2051, %v2059
    %v2074 = vrot.slane %v2073, 4
    %v2075 = vadd.f32 %v2073, %v2074
    %v2076 = vrot.slane %v2075, 2
    %v2077 = vadd.f32 %v2075, %v2076
    %v2078 = vrot.slane %v2077, 1
    %v2079 = vadd.f32 %v2077, %v2078
    %v2080 = vadd.f32 %v2052, %v2060
    %v2081 = vrot.slane %v2080, 4
    %v2082 = vadd.f32 %v2080, %v2081
    %v2083 = vrot.slane %v2082, 2
    %v2084 = vadd.f32 %v2082, %v2083
    %v2085 = vrot.slane %v2084, 1
    %v2086 = vadd.f32 %v2084, %v2085
    %v2087 = vadd.f32 %v2053, %v2061
    %v2088 = vrot.slane %v2087, 4
    %v2089 = vadd.f32 %v2087, %v2088
    %v2090 = vrot.slane %v2089, 2
    %v2091 = vadd.f32 %v2089, %v2090
    %v2092 = vrot.slane %v2091, 1
    %v2093 = vadd.f32 %v2091, %v2092
    %v2094 = vadd.f32 %v2054, %v2062
    %v2095 = vrot.slane %v2094, 4
    %v2096 = vadd.f32 %v2094, %v2095
    %v2097 = vrot.slane %v2096, 2
    %v2098 = vadd.f32 %v2096, %v2097
    %v2099 = vrot.slane %v2098, 1
    %v2100 = vadd.f32 %v2098, %v2099
    %v2101 = vadd.f32 %v2055, %v2063
    %v2102 = vrot.slane %v2101, 4
    %v2103 = vadd.f32 %v2101, %v2102
    %v2104 = vrot.slane %v2103, 2
    %v2105 = vadd.f32 %v2103, %v2104
    %v2106 = vrot.slane %v2105, 1
    %v2107 = vadd.f32 %v2105, %v2106
    %v2108 = vadd.f32 %v2056, %v2064
    %v2109 = vrot.slane %v2108, 4
    %v2110 = vadd.f32 %v2108, %v2109
    %v2111 = vrot.slane %v2110, 2
    %v2112 = vadd.f32 %v2110, %v2111
    %v2113 = vrot.slane %v2112, 1
    %v2114 = vadd.f32 %v2112, %v2113
    %v2115 = vadd.f32 %v2057, %v2065
    %v2116 = vrot.slane %v2115, 4
    %v2117 = vadd.f32 %v2115, %v2116
    %v2118 = vrot.slane %v2117, 2
    %v2119 = vadd.f32 %v2117, %v2118
    %v2120 = vrot.slane %v2119, 1
    %v2121 = vadd.f32 %v2119, %v2120
    %v2122 = vmul.f32 %v2072, 0.125
    %v2123 = vmul.f32 %v2079, 0.125
    %v2124 = vmul.f32 %v2086, 0.125
    %v2125 = vmul.f32 %v2093, 0.125
    %v2126 = vmul.f32 %v2100, 0.125
    %v2127 = vmul.f32 %v2107, 0.125
    %v2128 = vmul.f32 %v2114, 0.125
    %v2129 = vmul.f32 %v2121, 0.125
    %v2130 = vmul.f32 %v2042, %v2042
    %v2131 = vmul.f32 %v2043, %v2043
    %v2132 = vmul.f32 %v2044, %v2044
    %v2133 = vmul.f32 %v2045, %v2045
    %v2134 = vmul.f32 %v2046, %v2046
    %v2135 = vmul.f32 %v2047, %v2047
    %v2136 = vmul.f32 %v2048, %v2048
    %v2137 = vmul.f32 %v2049, %v2049
    %v2138 = vsub.f32 %v2122, %v2130
    %v2139 = vsub.f32 %v2123, %v2131
    %v2140 = vsub.f32 %v2124, %v2132
    %v2141 = vsub.f32 %v2125, %v2133
    %v2142 = vsub.f32 %v2126, %v2134
    %v2143 = vsub.f32 %v2127, %v2135
    %v2144 = vsub.f32 %v2128, %v2136
    %v2145 = vsub.f32 %v2129, %v2137
    %v2146 = vmax.f32 %v2138, 0.0
    %v2147 = vmax.f32 %v2139, 0.0
    %v2148 = vmax.f32 %v2140, 0.0
    %v2149 = vmax.f32 %v2141, 0.0
    %v2150 = vmax.f32 %v2142, 0.0
    %v2151 = vmax.f32 %v2143, 0.0
    %v2152 = vmax.f32 %v2144, 0.0
    %v2153 = vmax.f32 %v2145, 0.0
    %v2154 = vld [vmem:[%s13] sm:$0xff]
    %v2155 = vadd.f32 %v2146, 0.8
    %v2156 = vadd.f32 %v2147, 0.8
    %v2157 = vadd.f32 %v2148, 0.8
    %v2158 = vadd.f32 %v2149, 0.8
    %v2159 = vadd.f32 %v2150, 0.8
    %v2160 = vadd.f32 %v2151, 0.8
    %v2161 = vadd.f32 %v2152, 0.8
    %v2162 = vadd.f32 %v2153, 0.8
    %v2163 = vrsqrt.pop %v2155
    %v2164 = vrsqrt.pop %v2156
    %v2165 = vrsqrt.pop %v2157
    %v2166 = vrsqrt.pop %v2158
    %v2167 = vrsqrt.pop %v2159
    %v2168 = vrsqrt.pop %v2160
    %v2169 = vrsqrt.pop %v2161
    %v2170 = vrsqrt.pop %v2162
    %v2179 = vcombine.low %v2163, %v2164
    %v2180 = vcombine.low %v2165, %v2166
    %v2181 = vcombine.low %v2167, %v2168
    %v2182 = vcombine.low %v2169, %v2170
    %v2184 = vunpack.c.l.s4 1966171168
    %v2185 = vunpack.c.0.s8 %v2184
    %v2186 = vlaneseq
    %v2187 = vshrl.u32 %v2186, 7
    %v2188 = vsub.s32 %v2185, %v2187
    %v2189 = vrot.slane %v2179, %v2188
    %v2191 = vunpack.c.l.s4 1966171168
    %v2192 = vunpack.c.0.s8 %v2191
    %v2193 = vlaneseq
    %v2194 = vshrl.u32 %v2193, 7
    %v2195 = vsub.s32 %v2192, %v2194
    %v2196 = vrot.slane %v2180, %v2195
    %v2198 = vunpack.c.l.s4 1966171168
    %v2199 = vunpack.c.0.s8 %v2198
    %v2200 = vlaneseq
    %v2201 = vshrl.u32 %v2200, 7
    %v2202 = vsub.s32 %v2199, %v2201
    %v2203 = vrot.slane %v2181, %v2202
    %v2205 = vunpack.c.l.s4 1966171168
    %v2206 = vunpack.c.0.s8 %v2205
    %v2207 = vlaneseq
    %v2208 = vshrl.u32 %v2207, 7
    %v2209 = vsub.s32 %v2206, %v2208
    %v2210 = vrot.slane %v2182, %v2209
    %v2211 = vcombine.low %v2189, %v2196
    %v2212 = vcombine.low %v2203, %v2210
    %v2214 = vunpack.c.l.s4 1966171168
    %v2215 = vunpack.c.0.s8 %v2214
    %v2216 = vlaneseq
    %v2217 = vshrl.u32 %v2216, 7
    %v2218 = vsub.s32 %v2215, %v2217
    %v2219 = vrot.slane %v2211, %v2218
    %v2221 = vunpack.c.l.s4 1966171168
    %v2222 = vunpack.c.0.s8 %v2221
    %v2223 = vlaneseq
    %v2224 = vshrl.u32 %v2223, 7
    %v2225 = vsub.s32 %v2222, %v2224
    %v2226 = vrot.slane %v2212, %v2225
    %v2227 = vcombine.low %v2219, %v2226
    %v2229 = vmul.f32 %v2154, %v2227
    %v2230 = vld [vmem:[%s14] sm:$0xff]
    %v2232 = vlaneseq
    %v2233 = vshrl.u32 %v2232, 7
    %v2234 = vsub.s32 0, %v2233
    %v2235 = vrot.slane %v2229, %v2234
    %v2236 = vlaneseq
    %v2237 = vshrl.u32 %v2236, 7
    %v2238 = vsub.s32 1, %v2237
    %v2239 = vrot.slane %v2229, %v2238
    %v2240 = vlaneseq
    %v2241 = vshrl.u32 %v2240, 7
    %v2242 = vsub.s32 2, %v2241
    %v2243 = vrot.slane %v2229, %v2242
    %v2244 = vlaneseq
    %v2245 = vshrl.u32 %v2244, 7
    %v2246 = vsub.s32 3, %v2245
    %v2247 = vrot.slane %v2229, %v2246
    %v2248 = vlaneseq
    %v2249 = vshrl.u32 %v2248, 7
    %v2250 = vsub.s32 4, %v2249
    %v2251 = vrot.slane %v2229, %v2250
    %v2252 = vlaneseq
    %v2253 = vshrl.u32 %v2252, 7
    %v2254 = vsub.s32 5, %v2253
    %v2255 = vrot.slane %v2229, %v2254
    %v2256 = vlaneseq
    %v2257 = vshrl.u32 %v2256, 7
    %v2258 = vsub.s32 6, %v2257
    %v2259 = vrot.slane %v2229, %v2258
    %v2260 = vlaneseq
    %v2261 = vshrl.u32 %v2260, 7
    %v2262 = vsub.s32 7, %v2261
    %v2263 = vrot.slane %v2229, %v2262
    %v2272 = vmul.f32 %v2042, %v2235
    %v2273 = vmul.f32 %v2043, %v2239
    %v2274 = vmul.f32 %v2044, %v2243
    %v2275 = vmul.f32 %v2045, %v2247
    %v2276 = vmul.f32 %v2046, %v2251
    %v2277 = vmul.f32 %v2047, %v2255
    %v2278 = vmul.f32 %v2048, %v2259
    %v2279 = vmul.f32 %v2049, %v2263
    %v2288 = vcombine.low %v2272, %v2273
    %v2289 = vcombine.low %v2274, %v2275
    %v2290 = vcombine.low %v2276, %v2277
    %v2291 = vcombine.low %v2278, %v2279
    %v2293 = vunpack.c.l.s4 1966171168
    %v2294 = vunpack.c.0.s8 %v2293
    %v2295 = vlaneseq
    %v2296 = vshrl.u32 %v2295, 7
    %v2297 = vsub.s32 %v2294, %v2296
    %v2298 = vrot.slane %v2288, %v2297
    %v2300 = vunpack.c.l.s4 1966171168
    %v2301 = vunpack.c.0.s8 %v2300
    %v2302 = vlaneseq
    %v2303 = vshrl.u32 %v2302, 7
    %v2304 = vsub.s32 %v2301, %v2303
    %v2305 = vrot.slane %v2289, %v2304
    %v2307 = vunpack.c.l.s4 1966171168
    %v2308 = vunpack.c.0.s8 %v2307
    %v2309 = vlaneseq
    %v2310 = vshrl.u32 %v2309, 7
    %v2311 = vsub.s32 %v2308, %v2310
    %v2312 = vrot.slane %v2290, %v2311
    %v2314 = vunpack.c.l.s4 1966171168
    %v2315 = vunpack.c.0.s8 %v2314
    %v2316 = vlaneseq
    %v2317 = vshrl.u32 %v2316, 7
    %v2318 = vsub.s32 %v2315, %v2317
    %v2319 = vrot.slane %v2291, %v2318
    %v2320 = vcombine.low %v2298, %v2305
    %v2321 = vcombine.low %v2312, %v2319
    %v2323 = vunpack.c.l.s4 1966171168
    %v2324 = vunpack.c.0.s8 %v2323
    %v2325 = vlaneseq
    %v2326 = vshrl.u32 %v2325, 7
    %v2327 = vsub.s32 %v2324, %v2326
    %v2328 = vrot.slane %v2320, %v2327
    %v2330 = vunpack.c.l.s4 1966171168
    %v2331 = vunpack.c.0.s8 %v2330
    %v2332 = vlaneseq
    %v2333 = vshrl.u32 %v2332, 7
    %v2334 = vsub.s32 %v2331, %v2333
    %v2335 = vrot.slane %v2321, %v2334
    %v2336 = vcombine.low %v2328, %v2335
    %v2338 = vsub.f32 %v2230, %v2336
    %v2339 = vmul.f32 %v1704, %v2235
    %v2340 = vmul.f32 %v1706, %v2239
    %v2341 = vmul.f32 %v1790, %v2243
    %v2342 = vmul.f32 %v1792, %v2247
    %v2343 = vmul.f32 %v1876, %v2251
    %v2344 = vmul.f32 %v1878, %v2255
    %v2345 = vmul.f32 %v1962, %v2259
    %v2346 = vmul.f32 %v1964, %v2263
    %v2347 = vmul.f32 %v1708, %v2235
    %v2348 = vmul.f32 %v1710, %v2239
    %v2349 = vmul.f32 %v1794, %v2243
    %v2350 = vmul.f32 %v1796, %v2247
    %v2351 = vmul.f32 %v1880, %v2251
    %v2352 = vmul.f32 %v1882, %v2255
    %v2353 = vmul.f32 %v1966, %v2259
    %v2354 = vmul.f32 %v1968, %v2263
    %v2356 = vlaneseq
    %v2357 = vshrl.u32 %v2356, 7
    %v2358 = vsub.s32 0, %v2357
    %v2359 = vrot.slane %v2338, %v2358
    %v2360 = vlaneseq
    %v2361 = vshrl.u32 %v2360, 7
    %v2362 = vsub.s32 1, %v2361
    %v2363 = vrot.slane %v2338, %v2362
    %v2364 = vlaneseq
    %v2365 = vshrl.u32 %v2364, 7
    %v2366 = vsub.s32 2, %v2365
    %v2367 = vrot.slane %v2338, %v2366
    %v2368 = vlaneseq
    %v2369 = vshrl.u32 %v2368, 7
    %v2370 = vsub.s32 3, %v2369
    %v2371 = vrot.slane %v2338, %v2370
    %v2372 = vlaneseq
    %v2373 = vshrl.u32 %v2372, 7
    %v2374 = vsub.s32 4, %v2373
    %v2375 = vrot.slane %v2338, %v2374
    %v2376 = vlaneseq
    %v2377 = vshrl.u32 %v2376, 7
    %v2378 = vsub.s32 5, %v2377
    %v2379 = vrot.slane %v2338, %v2378
    %v2380 = vlaneseq
    %v2381 = vshrl.u32 %v2380, 7
    %v2382 = vsub.s32 6, %v2381
    %v2383 = vrot.slane %v2338, %v2382
    %v2384 = vlaneseq
    %v2385 = vshrl.u32 %v2384, 7
    %v2386 = vsub.s32 7, %v2385
    %v2387 = vrot.slane %v2338, %v2386
    %v2396 = vadd.f32 %v2339, %v2359
    %v2397 = vadd.f32 %v2340, %v2363
    %v2398 = vadd.f32 %v2341, %v2367
    %v2399 = vadd.f32 %v2342, %v2371
    %v2400 = vadd.f32 %v2343, %v2375
    %v2401 = vadd.f32 %v2344, %v2379
    %v2402 = vadd.f32 %v2345, %v2383
    %v2403 = vadd.f32 %v2346, %v2387
    %v2404 = vadd.f32 %v2347, %v2359
    %v2405 = vadd.f32 %v2348, %v2363
    %v2406 = vadd.f32 %v2349, %v2367
    %v2407 = vadd.f32 %v2350, %v2371
    %v2408 = vadd.f32 %v2351, %v2375
    %v2409 = vadd.f32 %v2352, %v2379
    %v2410 = vadd.f32 %v2353, %v2383
    %v2411 = vadd.f32 %v2354, %v2387
    %vm2412 = vcmp.gt.f32.partialorder %v2396, 0.0
    %vm2413 = vcmp.gt.f32.partialorder %v2397, 0.0
    %vm2414 = vcmp.gt.f32.partialorder %v2398, 0.0
    %vm2415 = vcmp.gt.f32.partialorder %v2399, 0.0
    %vm2416 = vcmp.gt.f32.partialorder %v2400, 0.0
    %vm2417 = vcmp.gt.f32.partialorder %v2401, 0.0
    %vm2418 = vcmp.gt.f32.partialorder %v2402, 0.0
    %vm2419 = vcmp.gt.f32.partialorder %v2403, 0.0
    %vm2420 = vcmp.gt.f32.partialorder %v2404, 0.0
    %vm2421 = vcmp.gt.f32.partialorder %v2405, 0.0
    %vm2422 = vcmp.gt.f32.partialorder %v2406, 0.0
    %vm2423 = vcmp.gt.f32.partialorder %v2407, 0.0
    %vm2424 = vcmp.gt.f32.partialorder %v2408, 0.0
    %vm2425 = vcmp.gt.f32.partialorder %v2409, 0.0
    %vm2426 = vcmp.gt.f32.partialorder %v2410, 0.0
    %vm2427 = vcmp.gt.f32.partialorder %v2411, 0.0
    %v2428 = vmul.f32 %v2396, 0.2
    %v2429 = vmul.f32 %v2397, 0.2
    %v2430 = vmul.f32 %v2398, 0.2
    %v2431 = vmul.f32 %v2399, 0.2
    %v2432 = vmul.f32 %v2400, 0.2
    %v2433 = vmul.f32 %v2401, 0.2
    %v2434 = vmul.f32 %v2402, 0.2
    %v2435 = vmul.f32 %v2403, 0.2
    %v2436 = vmul.f32 %v2404, 0.2
    %v2437 = vmul.f32 %v2405, 0.2
    %v2438 = vmul.f32 %v2406, 0.2
    %v2439 = vmul.f32 %v2407, 0.2
    %v2440 = vmul.f32 %v2408, 0.2
    %v2441 = vmul.f32 %v2409, 0.2
    %v2442 = vmul.f32 %v2410, 0.2
    %v2443 = vmul.f32 %v2411, 0.2
    %v2444 = vsel %vm2412, %v2396, %v2428
    %v2445 = vsel %vm2413, %v2397, %v2429
    %v2446 = vsel %vm2414, %v2398, %v2430
    %v2447 = vsel %vm2415, %v2399, %v2431
    %v2448 = vsel %vm2416, %v2400, %v2432
    %v2449 = vsel %vm2417, %v2401, %v2433
    %v2450 = vsel %vm2418, %v2402, %v2434
    %v2451 = vsel %vm2419, %v2403, %v2435
    %v2452 = vsel %vm2420, %v2404, %v2436
    %v2453 = vsel %vm2421, %v2405, %v2437
    %v2454 = vsel %vm2422, %v2406, %v2438
    %v2455 = vsel %vm2423, %v2407, %v2439
    %v2456 = vsel %vm2424, %v2408, %v2440
    %v2457 = vsel %vm2425, %v2409, %v2441
    %v2458 = vsel %vm2426, %v2410, %v2442
    %v2459 = vsel %vm2427, %v2411, %v2443
    %s2460 = smul.u32 4, 128
    %s2461 = smul.u32 %s2460, 1
    %s2462 = sshll.u32 %s2461, 4
    %2463 = dma.done %s178, %s2462
    %v2464 = vpack.c.bf16 %v2452, %v2444
    %v2465 = vpack.c.bf16 %v2453, %v2445
    %v2466 = vpack.c.bf16 %v2454, %v2446
    %v2467 = vpack.c.bf16 %v2455, %v2447
    %v2468 = vpack.c.bf16 %v2456, %v2448
    %v2469 = vpack.c.bf16 %v2457, %v2449
    %v2470 = vpack.c.bf16 %v2458, %v2450
    %v2471 = vpack.c.bf16 %v2459, %v2451
    %v2472 = vld [vmem:[#allocation3] sm:$0xff]
    %v2473 = vld [vmem:[#allocation3 + $0x8] sm:$0xff]
    %v2474 = vld [vmem:[#allocation3 + $0x10] sm:$0xff]
    %v2475 = vld [vmem:[#allocation3 + $0x18] sm:$0xff]
    %v2476 = vld [vmem:[#allocation3 + $0x20] sm:$0xff]
    %v2477 = vld [vmem:[#allocation3 + $0x28] sm:$0xff]
    %v2478 = vld [vmem:[#allocation3 + $0x30] sm:$0xff]
    %v2479 = vld [vmem:[#allocation3 + $0x38] sm:$0xff]
    %v2480 = vld [vmem:[#allocation3 + $0x40] sm:$0xff]
    %v2481 = vld [vmem:[#allocation3 + $0x48] sm:$0xff]
    %v2482 = vld [vmem:[#allocation3 + $0x50] sm:$0xff]
    %v2483 = vld [vmem:[#allocation3 + $0x58] sm:$0xff]
    %v2484 = vld [vmem:[#allocation3 + $0x60] sm:$0xff]
    %v2485 = vld [vmem:[#allocation3 + $0x68] sm:$0xff]
    %v2486 = vld [vmem:[#allocation3 + $0x70] sm:$0xff]
    %v2487 = vld [vmem:[#allocation3 + $0x78] sm:$0xff]
    %v2488 = vld [vmem:[#allocation3 + $0x80] sm:$0xff]
    %v2489 = vld [vmem:[#allocation3 + $0x88] sm:$0xff]
    %v2490 = vld [vmem:[#allocation3 + $0x90] sm:$0xff]
    %v2491 = vld [vmem:[#allocation3 + $0x98] sm:$0xff]
    %v2492 = vld [vmem:[#allocation3 + $0xa0] sm:$0xff]
    %v2493 = vld [vmem:[#allocation3 + $0xa8] sm:$0xff]
    %v2494 = vld [vmem:[#allocation3 + $0xb0] sm:$0xff]
    %v2495 = vld [vmem:[#allocation3 + $0xb8] sm:$0xff]
    %v2496 = vld [vmem:[#allocation3 + $0xc0] sm:$0xff]
    %v2497 = vld [vmem:[#allocation3 + $0xc8] sm:$0xff]
    %v2498 = vld [vmem:[#allocation3 + $0xd0] sm:$0xff]
    %v2499 = vld [vmem:[#allocation3 + $0xd8] sm:$0xff]
    %v2500 = vld [vmem:[#allocation3 + $0xe0] sm:$0xff]
    %v2501 = vld [vmem:[#allocation3 + $0xe8] sm:$0xff]
    %v2502 = vld [vmem:[#allocation3 + $0xf0] sm:$0xff]
    %v2503 = vld [vmem:[#allocation3 + $0xf8] sm:$0xff]
    %v2504 = vld [vmem:[#allocation3 + $0x100] sm:$0xff]
    %v2505 = vld [vmem:[#allocation3 + $0x108] sm:$0xff]
    %v2506 = vld [vmem:[#allocation3 + $0x110] sm:$0xff]
    %v2507 = vld [vmem:[#allocation3 + $0x118] sm:$0xff]
    %v2508 = vld [vmem:[#allocation3 + $0x120] sm:$0xff]
    %v2509 = vld [vmem:[#allocation3 + $0x128] sm:$0xff]
    %v2510 = vld [vmem:[#allocation3 + $0x130] sm:$0xff]
    %v2511 = vld [vmem:[#allocation3 + $0x138] sm:$0xff]
    %v2512 = vld [vmem:[#allocation3 + $0x140] sm:$0xff]
    %v2513 = vld [vmem:[#allocation3 + $0x148] sm:$0xff]
    %v2514 = vld [vmem:[#allocation3 + $0x150] sm:$0xff]
    %v2515 = vld [vmem:[#allocation3 + $0x158] sm:$0xff]
    %v2516 = vld [vmem:[#allocation3 + $0x160] sm:$0xff]
    %v2517 = vld [vmem:[#allocation3 + $0x168] sm:$0xff]
    %v2518 = vld [vmem:[#allocation3 + $0x170] sm:$0xff]
    %v2519 = vld [vmem:[#allocation3 + $0x178] sm:$0xff]
    %v2520 = vld [vmem:[#allocation3 + $0x180] sm:$0xff]
    %v2521 = vld [vmem:[#allocation3 + $0x188] sm:$0xff]
    %v2522 = vld [vmem:[#allocation3 + $0x190] sm:$0xff]
    %v2523 = vld [vmem:[#allocation3 + $0x198] sm:$0xff]
    %v2524 = vld [vmem:[#allocation3 + $0x1a0] sm:$0xff]
    %v2525 = vld [vmem:[#allocation3 + $0x1a8] sm:$0xff]
    %v2526 = vld [vmem:[#allocation3 + $0x1b0] sm:$0xff]
    %v2527 = vld [vmem:[#allocation3 + $0x1b8] sm:$0xff]
    %v2528 = vld [vmem:[#allocation3 + $0x1c0] sm:$0xff]
    %v2529 = vld [vmem:[#allocation3 + $0x1c8] sm:$0xff]
    %v2530 = vld [vmem:[#allocation3 + $0x1d0] sm:$0xff]
    %v2531 = vld [vmem:[#allocation3 + $0x1d8] sm:$0xff]
    %v2532 = vld [vmem:[#allocation3 + $0x1e0] sm:$0xff]
    %v2533 = vld [vmem:[#allocation3 + $0x1e8] sm:$0xff]
    %v2534 = vld [vmem:[#allocation3 + $0x1f0] sm:$0xff]
    %v2535 = vld [vmem:[#allocation3 + $0x1f8] sm:$0xff]
    %v2536 = vld [vmem:[%s16] sm:$0x1]
    %v2538 = vlaneseq
    %v2539 = vshrl.u32 %v2538, 7
    %v2540 = vsub.s32 0, %v2539
    %v2541 = vrot.slane %v2536, %v2540
    %2543 = vmatprep.subr.bf16.mxu0 0
    %2544 = vmatpush1.bf16.msra.mxu0 %v2472
    %2545 = vmatprep.subr.bf16.mxu0 0
    %2546 = vmatpush1.bf16.msra.mxu0 %v2473
    %2547 = vmatprep.subr.bf16.mxu0 0
    %2548 = vmatpush1.bf16.msra.mxu0 %v2474
    %2549 = vmatprep.subr.bf16.mxu0 0
    %2550 = vmatpush1.bf16.msra.mxu0 %v2475
    %2551 = vmatprep.subr.bf16.mxu0 0
    %2552 = vmatpush1.bf16.msra.mxu0 %v2476
    %2553 = vmatprep.subr.bf16.mxu0 0
    %2554 = vmatpush1.bf16.msra.mxu0 %v2477
    %2555 = vmatprep.subr.bf16.mxu0 0
    %2556 = vmatpush1.bf16.msra.mxu0 %v2478
    %2557 = vmatprep.subr.bf16.mxu0 0
    %2558 = vmatpush1.bf16.msra.mxu0 %v2479
    %2559 = vmatprep.subr.bf16.mxu0 0
    %2560 = vmatpush1.bf16.msra.mxu0 %v2480
    %2561 = vmatprep.subr.bf16.mxu0 0
    %2562 = vmatpush1.bf16.msra.mxu0 %v2481
    %2563 = vmatprep.subr.bf16.mxu0 0
    %2564 = vmatpush1.bf16.msra.mxu0 %v2482
    %2565 = vmatprep.subr.bf16.mxu0 0
    %2566 = vmatpush1.bf16.msra.mxu0 %v2483
    %2567 = vmatprep.subr.bf16.mxu0 0
    %2568 = vmatpush1.bf16.msra.mxu0 %v2484
    %2569 = vmatprep.subr.bf16.mxu0 0
    %2570 = vmatpush1.bf16.msra.mxu0 %v2485
    %2571 = vmatprep.subr.bf16.mxu0 0
    %2572 = vmatpush1.bf16.msra.mxu0 %v2486
    %2573 = vmatprep.subr.bf16.mxu0 0
    %2574 = vmatpush1.bf16.msra.mxu0 %v2487
    %2575 = vmatprep.mubr.bf16.mxu0 %v2465
    %2576 = vmatmul.mubr.bf16.gmra.mrb[0].mxu0 %v2464
    %v2577 = vpop.f32.mrb[0].mxu0
    %v2578 = vadd.f32 %v2541, %v2577
    %v2579 = vpop.f32.mrb[0].mxu0
    %v2580 = vpop.f32.mrb[0].mxu0
    %v2581 = vadd.f32 %v2541, %v2580
    %v2582 = vpop.f32.mrb[0].mxu0
    %2583 = vdwg.mxu0
    %2584 = vmatprep.subr.bf16.mxu0 0
    %2585 = vmatpush1.bf16.msra.mxu0 %v2488
    %2586 = vmatprep.subr.bf16.mxu0 0
    %2587 = vmatpush1.bf16.msra.mxu0 %v2489
    %2588 = vmatprep.subr.bf16.mxu0 0
    %2589 = vmatpush1.bf16.msra.mxu0 %v2490
    %2590 = vmatprep.subr.bf16.mxu0 0
    %2591 = vmatpush1.bf16.msra.mxu0 %v2491
    %2592 = vmatprep.subr.bf16.mxu0 0
    %2593 = vmatpush1.bf16.msra.mxu0 %v2492
    %2594 = vmatprep.subr.bf16.mxu0 0
    %2595 = vmatpush1.bf16.msra.mxu0 %v2493
    %2596 = vmatprep.subr.bf16.mxu0 0
    %2597 = vmatpush1.bf16.msra.mxu0 %v2494
    %2598 = vmatprep.subr.bf16.mxu0 0
    %2599 = vmatpush1.bf16.msra.mxu0 %v2495
    %2600 = vmatprep.subr.bf16.mxu0 0
    %2601 = vmatpush1.bf16.msra.mxu0 %v2496
    %2602 = vmatprep.subr.bf16.mxu0 0
    %2603 = vmatpush1.bf16.msra.mxu0 %v2497
    %2604 = vmatprep.subr.bf16.mxu0 0
    %2605 = vmatpush1.bf16.msra.mxu0 %v2498
    %2606 = vmatprep.subr.bf16.mxu0 0
    %2607 = vmatpush1.bf16.msra.mxu0 %v2499
    %2608 = vmatprep.subr.bf16.mxu0 0
    %2609 = vmatpush1.bf16.msra.mxu0 %v2500
    %2610 = vmatprep.subr.bf16.mxu0 0
    %2611 = vmatpush1.bf16.msra.mxu0 %v2501
    %2612 = vmatprep.subr.bf16.mxu0 0
    %2613 = vmatpush1.bf16.msra.mxu0 %v2502
    %2614 = vmatprep.subr.bf16.mxu0 0
    %2615 = vmatpush1.bf16.msra.mxu0 %v2503
    %2616 = vmatprep.mubr.bf16.mxu0 %v2467
    %2617 = vmatmul.mubr.bf16.gmra.mrb[0].mxu0 %v2466
    %v2618 = vpop.f32.mrb[0].mxu0
    %v2619 = vadd.f32 %v2578, %v2618
    %v2620 = vpop.f32.mrb[0].mxu0
    %v2621 = vpop.f32.mrb[0].mxu0
    %v2622 = vadd.f32 %v2581, %v2621
    %v2623 = vpop.f32.mrb[0].mxu0
    %2624 = vdwg.mxu0
    %2625 = vmatprep.subr.bf16.mxu0 0
    %2626 = vmatpush1.bf16.msra.mxu0 %v2504
    %2627 = vmatprep.subr.bf16.mxu0 0
    %2628 = vmatpush1.bf16.msra.mxu0 %v2505
    %2629 = vmatprep.subr.bf16.mxu0 0
    %2630 = vmatpush1.bf16.msra.mxu0 %v2506
    %2631 = vmatprep.subr.bf16.mxu0 0
    %2632 = vmatpush1.bf16.msra.mxu0 %v2507
    %2633 = vmatprep.subr.bf16.mxu0 0
    %2634 = vmatpush1.bf16.msra.mxu0 %v2508
    %2635 = vmatprep.subr.bf16.mxu0 0
    %2636 = vmatpush1.bf16.msra.mxu0 %v2509
    %2637 = vmatprep.subr.bf16.mxu0 0
    %2638 = vmatpush1.bf16.msra.mxu0 %v2510
    %2639 = vmatprep.subr.bf16.mxu0 0
    %2640 = vmatpush1.bf16.msra.mxu0 %v2511
    %2641 = vmatprep.subr.bf16.mxu0 0
    %2642 = vmatpush1.bf16.msra.mxu0 %v2512
    %2643 = vmatprep.subr.bf16.mxu0 0
    %2644 = vmatpush1.bf16.msra.mxu0 %v2513
    %2645 = vmatprep.subr.bf16.mxu0 0
    %2646 = vmatpush1.bf16.msra.mxu0 %v2514
    %2647 = vmatprep.subr.bf16.mxu0 0
    %2648 = vmatpush1.bf16.msra.mxu0 %v2515
    %2649 = vmatprep.subr.bf16.mxu0 0
    %2650 = vmatpush1.bf16.msra.mxu0 %v2516
    %2651 = vmatprep.subr.bf16.mxu0 0
    %2652 = vmatpush1.bf16.msra.mxu0 %v2517
    %2653 = vmatprep.subr.bf16.mxu0 0
    %2654 = vmatpush1.bf16.msra.mxu0 %v2518
    %2655 = vmatprep.subr.bf16.mxu0 0
    %2656 = vmatpush1.bf16.msra.mxu0 %v2519
    %2657 = vmatprep.mubr.bf16.mxu0 %v2469
    %2658 = vmatmul.mubr.bf16.gmra.mrb[0].mxu0 %v2468
    %v2659 = vpop.f32.mrb[0].mxu0
    %v2660 = vadd.f32 %v2619, %v2659
    %v2661 = vpop.f32.mrb[0].mxu0
    %v2662 = vpop.f32.mrb[0].mxu0
    %v2663 = vadd.f32 %v2622, %v2662
    %v2664 = vpop.f32.mrb[0].mxu0
    %2665 = vdwg.mxu0
    %2666 = vmatprep.subr.bf16.mxu0 0
    %2667 = vmatpush1.bf16.msra.mxu0 %v2520
    %2668 = vmatprep.subr.bf16.mxu0 0
    %2669 = vmatpush1.bf16.msra.mxu0 %v2521
    %2670 = vmatprep.subr.bf16.mxu0 0
    %2671 = vmatpush1.bf16.msra.mxu0 %v2522
    %2672 = vmatprep.subr.bf16.mxu0 0
    %2673 = vmatpush1.bf16.msra.mxu0 %v2523
    %2674 = vmatprep.subr.bf16.mxu0 0
    %2675 = vmatpush1.bf16.msra.mxu0 %v2524
    %2676 = vmatprep.subr.bf16.mxu0 0
    %2677 = vmatpush1.bf16.msra.mxu0 %v2525
    %2678 = vmatprep.subr.bf16.mxu0 0
    %2679 = vmatpush1.bf16.msra.mxu0 %v2526
    %2680 = vmatprep.subr.bf16.mxu0 0
    %2681 = vmatpush1.bf16.msra.mxu0 %v2527
    %2682 = vmatprep.subr.bf16.mxu0 0
    %2683 = vmatpush1.bf16.msra.mxu0 %v2528
    %2684 = vmatprep.subr.bf16.mxu0 0
    %2685 = vmatpush1.bf16.msra.mxu0 %v2529
    %2686 = vmatprep.subr.bf16.mxu0 0
    %2687 = vmatpush1.bf16.msra.mxu0 %v2530
    %2688 = vmatprep.subr.bf16.mxu0 0
    %2689 = vmatpush1.bf16.msra.mxu0 %v2531
    %2690 = vmatprep.subr.bf16.mxu0 0
    %2691 = vmatpush1.bf16.msra.mxu0 %v2532
    %2692 = vmatprep.subr.bf16.mxu0 0
    %2693 = vmatpush1.bf16.msra.mxu0 %v2533
    %2694 = vmatprep.subr.bf16.mxu0 0
    %2695 = vmatpush1.bf16.msra.mxu0 %v2534
    %2696 = vmatprep.subr.bf16.mxu0 0
    %2697 = vmatpush1.bf16.msra.mxu0 %v2535
    %2698 = vmatprep.mubr.bf16.mxu0 %v2471
    %2699 = vmatmul.mubr.bf16.gmra.mrb[0].mxu0 %v2470
    %v2700 = vpop.f32.mrb[0].mxu0
    %v2701 = vadd.f32 %v2660, %v2700
    %v2702 = vpop.f32.mrb[0].mxu0
    %v2703 = vpop.f32.mrb[0].mxu0
    %v2704 = vadd.f32 %v2663, %v2703
    %v2705 = vpop.f32.mrb[0].mxu0
    %2706 = vdwg.mxu0
    %v2707 = vtanh.pop %v2701
    %v2708 = vtanh.pop %v2704
    %2709 = vst [vmem:[#allocation17] sm:$0xff] %v2707
    %2710 = vst [vmem:[#allocation17 + $0x8] sm:$0xff] %v2708
    // Predicated region
    $region94: #{tpu_custom_call.1} parent=1 // pred_check
      _
    $region95: #{tpu_custom_call.1} parent=1 // pred_check_branch
      %2712 = sbr.rel (0) target = $region97
    $region96: #{tpu_custom_call.1} parent=1 // pred_region
      %s2714 = ssub.s32 256, 256
      %2715 = vsyncadd [#allocation7], %s2714
      %s2716 = sshll.u32 [#allocation17], 4
      %s2717 = int_to_ptr.vmem [resolvable:$true] %s2716
      %2722 = dma.vmem_to_hbm [thread:$0]  %s2717, 256, %s17, [#allocation7], 128, 128, 8
    $region97: #{tpu_custom_call.1} parent=1 // pred_fallthru
      _
    // Predicated region
    $region98: #{tpu_custom_call.1} parent=1 // pred_check
      _
    $region99: #{tpu_custom_call.1} parent=1 // pred_check_branch
      %2724 = sbr.rel (0) target = $region101
    $region100: #{tpu_custom_call.1} parent=1 // pred_region
      %2725 = dma.done [#allocation7], 256
    $region101: #{tpu_custom_call.1} parent=1 // pred_fallthru
      _
    %2726 = vsyncpa [#allocation6], 1
    %2727 = vsyncpa [#allocation9], 1
    %2728 = vsyncpa [#allocation12], 1
    %2729 = vsyncpa [#allocation15], 1
    %2730 = vsyncpa [#allocation7], 1
  %2731 = vsyncmov [#allocation4]
  %s2732 = vpop.sfrf %2731
  %p2733 = scmp.eq.s32.totalorder %s2732, 0
  %p2734 = pneg %p2733
  %2736 = shalt.err (%p2734)
  %s2737 = scalar_lea.sflag [#allocation4], 1
  %2738 = vsyncmov %s2737
  %s2739 = vpop.sfrf %2738
  %p2740 = scmp.eq.s32.totalorder %s2739, 0
  %p2741 = pneg %p2740
  %2743 = shalt.err (%p2741)

</llo_original>
